<compile_context>
chip_gen: v5e
topology: v5e:2x2
jax: 0.10.0
libtpu: 0.0.40
codegen_flags: <defaults>
</compile_context>

<pallas_src>
import numpy as np
import jax
import jax.numpy as jnp
from jax import lax
from jax.experimental import pallas as pl
from jax.experimental.pallas import tpu as pltpu


# ----------------------------------------------------------------------------
# Fused forward kernel (one grid step = one batch tile of `bm` images)
# ----------------------------------------------------------------------------
def _cnn_fused_kernel(x_ref, a1e_ref, a1o_ref, b1_ref,
                      a2e_ref, a2o_ref, b2_ref, wfc_ref, bfc_ref, out_ref):
    bm = x_ref.shape[1]                              # batch-tile size (8)

    # ---- conv1 (5x5, Cin=1, Cout=10) + width-direction 2x2 max -------------
    # rows of ye/yo are (oh*bm + b); lanes are (pw*10 + co), pw in [0,12)
    ye = jnp.zeros((24 * bm, 120), jnp.float32)
    yo = jnp.zeros((24 * bm, 120), jnp.float32)
    for ki in range(5):
        xk = x_ref[ki:ki + 24, :, :].reshape(24 * bm, 28)
        ye = ye + jnp.dot(xk, a1e_ref[ki], preferred_element_type=jnp.float32)
        yo = yo + jnp.dot(xk, a1o_ref[ki], preferred_element_type=jnp.float32)
    b1 = b1_ref[...]                                  # (1, 120)
    mw = jnp.maximum(ye + b1, yo + b1).reshape(24, bm, 120)
    # height-direction 2x2 max + ReLU  ->  p1[ph, b, pw*10 + ci]
    h1 = jnp.stack(
        [jnp.maximum(mw[2 * ph], mw[2 * ph + 1]) for ph in range(12)], axis=0)
    h1 = jnp.maximum(h1, 0.0)                         # (12, bm, 120)

    # ---- conv2 (5x5, Cin=10, Cout=20) + width-direction 2x2 max ------------
    # rows are (oh2*bm + b); lanes are (qw*20 + do), qw in [0,4)
    ze = jnp.zeros((8 * bm, 80), jnp.float32)
    zo = jnp.zeros((8 * bm, 80), jnp.float32)
    for ki in range(5):
        hk = h1[ki:ki + 8].reshape(8 * bm, 120)
        ze = ze + jnp.dot(hk, a2e_ref[ki], preferred_element_type=jnp.float32)
        zo = zo + jnp.dot(hk, a2o_ref[ki], preferred_element_type=jnp.float32)
    b2 = b2_ref[...]                                  # (1, 80)
    m2 = jnp.maximum(ze + b2, zo + b2).reshape(8, bm, 80)

    # ---- height-direction 2x2 max + ReLU + fully connected -----------------
    acc = jnp.zeros((bm, 10), jnp.float32)
    for qh in range(4):
        row = jnp.maximum(jnp.maximum(m2[2 * qh], m2[2 * qh + 1]), 0.0)  # (bm, 80)
        acc = acc + jnp.dot(row, wfc_ref[qh], preferred_element_type=jnp.float32)
    out_ref[...] = (acc + bfc_ref[...]).astype(out_ref.dtype)


# ----------------------------------------------------------------------------
# One-time host-side weight re-layout (hoisted out of the forward pass)
# ----------------------------------------------------------------------------
def prepare_params(params):
    w1 = np.asarray(params["w1"], np.float32)     # (10, 1, 5, 5)
    b1 = np.asarray(params["b1"], np.float32)     # (10,)
    w2 = np.asarray(params["w2"], np.float32)     # (20, 10, 5, 5)
    b2 = np.asarray(params["b2"], np.float32)     # (20,)
    wfc = np.asarray(params["wfc"], np.float32)   # (10, 320)
    bfc = np.asarray(params["bfc"], np.float32)   # (10,)

    # conv1 bands: a1e[ki][w_in, pw*10+co] = w1[co,0,ki,w_in-2*pw]   (ow = 2*pw)
    #              a1o[ki][w_in, pw*10+co] = w1[co,0,ki,w_in-2*pw-1] (ow = 2*pw+1)
    a1e = np.zeros((5, 28, 120), np.float32)
    a1o = np.zeros((5, 28, 120), np.float32)
    for ki in range(5):
        for kj in range(5):
            for pw in range(12):
                a1e[ki, 2 * pw + kj, pw * 10:(pw + 1) * 10] = w1[:, 0, ki, kj]
                a1o[ki, 2 * pw + 1 + kj, pw * 10:(pw + 1) * 10] = w1[:, 0, ki, kj]

    # conv2 bands: a2e[ki][pw*10+ci, qw*20+do] = w2[do,ci,ki,pw-2*qw]
    a2e = np.zeros((5, 120, 80), np.float32)
    a2o = np.zeros((5, 120, 80), np.float32)
    for ki in range(5):
        for kj in range(5):
            for qw in range(4):
                blk = w2[:, :, ki, kj].T                      # (ci=10, do=20)
                pe, po = 2 * qw + kj, 2 * qw + 1 + kj
                a2e[ki, pe * 10:(pe + 1) * 10, qw * 20:(qw + 1) * 20] = blk
                a2o[ki, po * 10:(po + 1) * 10, qw * 20:(qw + 1) * 20] = blk

    # fc weight permuted for the internal [qh][qw*20+do] layout:
    # wfc_r[qh, qw*20+do, o] = wfc[o, do*16 + qh*4 + qw]
    wfc_r = wfc.reshape(10, 20, 4, 4).transpose(2, 3, 1, 0).reshape(4, 80, 10)

    return {
        "a1e": jnp.asarray(a1e), "a1o": jnp.asarray(a1o),
        "b1": jnp.asarray(np.tile(b1, 12)[None, :]),          # (1, 120)
        "a2e": jnp.asarray(a2e), "a2o": jnp.asarray(a2o),
        "b2": jnp.asarray(np.tile(b2, 4)[None, :]),           # (1, 80)
        "wfc": jnp.asarray(wfc_r),                            # (4, 80, 10)
        "bfc": jnp.asarray(bfc[None, :]),                     # (1, 10)
    }


# ----------------------------------------------------------------------------
# Forward wrapper: one gridded pallas_call over batch tiles
# ----------------------------------------------------------------------------
def cnn_forward(x, prep, block_batch=8):
    """x: (N, 1, 28, 28) float32  ->  logits (N, 10) float32."""
    n = x.shape[0]
    n_pad = ((n + block_batch - 1) // block_batch) * block_batch
    xt = jnp.transpose(x.reshape(n, 28, 28), (1, 0, 2))       # (28, N, 28) = [h, b, w]
    if n_pad != n:
        xt = jnp.pad(xt, ((0, 0), (0, n_pad - n), (0, 0)))

    out = pl.pallas_call(
        _cnn_fused_kernel,
        out_shape=jax.ShapeDtypeStruct((n_pad, 10), jnp.float32),
        grid=(n_pad // block_batch,),
        in_specs=[
            pl.BlockSpec((28, block_batch, 28), lambda i: (0, i, 0)),   # input tile
            pl.BlockSpec((5, 28, 120), lambda i: (0, 0, 0)),            # conv1 band (even cols)
            pl.BlockSpec((5, 28, 120), lambda i: (0, 0, 0)),            # conv1 band (odd cols)
            pl.BlockSpec((1, 120), lambda i: (0, 0)),                   # conv1 bias (tiled)
            pl.BlockSpec((5, 120, 80), lambda i: (0, 0, 0)),            # conv2 band (even cols)
            pl.BlockSpec((5, 120, 80), lambda i: (0, 0, 0)),            # conv2 band (odd cols)
            pl.BlockSpec((1, 80), lambda i: (0, 0)),                    # conv2 bias (tiled)
            pl.BlockSpec((4, 80, 10), lambda i: (0, 0, 0)),             # fc weight (permuted)
            pl.BlockSpec((1, 10), lambda i: (0, 0)),                    # fc bias
        ],
        out_specs=pl.BlockSpec((block_batch, 10), lambda i: (i, 0)),
        compiler_params=pltpu.CompilerParams(
            dimension_semantics=("parallel",)),
    )(xt, prep["a1e"], prep["a1o"], prep["b1"],
      prep["a2e"], prep["a2o"], prep["b2"], prep["wfc"], prep["bfc"])
    return out[:n]


# ----------------------------------------------------------------------------
# Params + pure-JAX reference (for a numerical self-check)
# ----------------------------------------------------------------------------
def init_params(key):
    ks = jax.random.split(key, 6)
    scale = 0.1
    return {
        "w1": scale * jax.random.normal(ks[0], (10, 1, 5, 5), jnp.float32),
        "b1": scale * jax.random.normal(ks[1], (10,), jnp.float32),
        "w2": scale * jax.random.normal(ks[2], (20, 10, 5, 5), jnp.float32),
        "b2": scale * jax.random.normal(ks[3], (20,), jnp.float32),
        "wfc": scale * jax.random.normal(ks[4], (10, 320), jnp.float32),
        "bfc": scale * jax.random.normal(ks[5], (10,), jnp.float32),
    }


def reference_forward(x, params):
    dn = ("NCHW", "OIHW", "NCHW")
    y = lax.conv_general_dilated(x, params["w1"], (1, 1), "VALID", dimension_numbers=dn)
    y = y + params["b1"][None, :, None, None]
    y = lax.reduce_window(y, -jnp.inf, lax.max, (1, 1, 2, 2), (1, 1, 2, 2), "VALID")
    y = jnp.maximum(y, 0.0)
    y = lax.conv_general_dilated(y, params["w2"], (1, 1), "VALID", dimension_numbers=dn)
    y = y + params["b2"][None, :, None, None]
    y = lax.reduce_window(y, -jnp.inf, lax.max, (1, 1, 2, 2), (1, 1, 2, 2), "VALID")
    y = jnp.maximum(y, 0.0)
    y = y.reshape(x.shape[0], -1)
    return y @ params["wfc"].T + params["bfc"]


if __name__ == "__main__":
    key = jax.random.PRNGKey(0)
    pkey, xkey = jax.random.split(key)
    params = init_params(pkey)
    prep = prepare_params(params)                   # one-time weight re-layout
    # forward pass implies 28x28 single-channel input (320 = 20 * 4 * 4)
    x = jax.random.normal(xkey, (2, 1, 28, 28), jnp.float32)

    out = jax.jit(cnn_forward)(x, prep)
    jax.block_until_ready(out)
    assert out.shape == (2, 10) and out.dtype == jnp.float32

    ref = reference_forward(x, params)
    err = float(jnp.max(jnp.abs(out - ref)))
    assert err < 5e-2, f"kernel/reference mismatch: max abs err = {err}"
    print("KERNEL_OK")
</pallas_src>

<mosaic_0001>
module attributes {stable_mosaic.version = 11 : i64} {
  func.func @_cnn_fused_kernel(%arg0: i32, %arg1: memref<28x8x28xf32, #tpu.memory_space<vmem>>, %arg2: memref<5x28x120xf32, #tpu.memory_space<vmem>>, %arg3: memref<5x28x120xf32, #tpu.memory_space<vmem>>, %arg4: memref<1x120xf32, #tpu.memory_space<vmem>>, %arg5: memref<5x120x80xf32, #tpu.memory_space<vmem>>, %arg6: memref<5x120x80xf32, #tpu.memory_space<vmem>>, %arg7: memref<1x80xf32, #tpu.memory_space<vmem>>, %arg8: memref<4x80x10xf32, #tpu.memory_space<vmem>>, %arg9: memref<1x10xf32, #tpu.memory_space<vmem>>, %arg10: memref<8x10xf32, #tpu.memory_space<vmem>>) attributes {dimension_semantics = [#tpu.dimension_semantics<parallel>], iteration_bounds = array<i64: 1>, scalar_prefetch = 0 : i64, scratch_operands = 0 : i64, tpu.core_type = #tpu.core_type<tc>, window_params = [{transform_indices = @transform_0, window_bounds = array<i64: 28, 8, 28>}, {pipeline_mode = #tpu.pipeline_mode<synchronous>, transform_indices = @transform_1, window_bounds = array<i64: 5, 28, 120>}, {pipeline_mode = #tpu.pipeline_mode<synchronous>, transform_indices = @transform_2, window_bounds = array<i64: 5, 28, 120>}, {pipeline_mode = #tpu.pipeline_mode<synchronous>, transform_indices = @transform_3, window_bounds = array<i64: 1, 120>}, {pipeline_mode = #tpu.pipeline_mode<synchronous>, transform_indices = @transform_4, window_bounds = array<i64: 5, 120, 80>}, {pipeline_mode = #tpu.pipeline_mode<synchronous>, transform_indices = @transform_5, window_bounds = array<i64: 5, 120, 80>}, {pipeline_mode = #tpu.pipeline_mode<synchronous>, transform_indices = @transform_6, window_bounds = array<i64: 1, 80>}, {pipeline_mode = #tpu.pipeline_mode<synchronous>, transform_indices = @transform_7, window_bounds = array<i64: 4, 80, 10>}, {pipeline_mode = #tpu.pipeline_mode<synchronous>, transform_indices = @transform_8, window_bounds = array<i64: 1, 10>}, {transform_indices = @transform_9, window_bounds = array<i64: 8, 10>}]} {
    %cst = arith.constant 0.000000e+00 : f32
    %0 = vector.broadcast %cst : f32 to vector<192x120xf32>
    %cst_0 = arith.constant 0.000000e+00 : f32
    %1 = vector.broadcast %cst_0 : f32 to vector<192x120xf32>
    %c0 = arith.constant 0 : index
    %c0_1 = arith.constant 0 : index
    %c0_2 = arith.constant 0 : index
    %2 = vector.load %arg1[%c0, %c0_1, %c0_2] : memref<28x8x28xf32, #tpu.memory_space<vmem>>, vector<24x8x28xf32>
    %3 = vector.shape_cast %2 : vector<24x8x28xf32> to vector<192x28xf32>
    %c0_3 = arith.constant 0 : index
    %c0_4 = arith.constant 0 : index
    %c0_5 = arith.constant 0 : index
    %4 = vector.load %arg2[%c0_3, %c0_4, %c0_5] : memref<5x28x120xf32, #tpu.memory_space<vmem>>, vector<1x28x120xf32>
    %5 = vector.shape_cast %4 : vector<1x28x120xf32> to vector<28x120xf32>
    %cst_6 = arith.constant dense<0.000000e+00> : vector<192x120xf32>
    %6 = tpu.matmul %3, %5, %cst_6 {dimension_numbers = #tpu.dot_dimension_numbers<[1], [0], [0], [1], [0, 0, 1, 1], [], []>} : vector<192x28xf32>, vector<28x120xf32>, vector<192x120xf32> -> vector<192x120xf32>
    %7 = arith.addf %0, %6 : vector<192x120xf32>
    %c0_7 = arith.constant 0 : index
    %c0_8 = arith.constant 0 : index
    %c0_9 = arith.constant 0 : index
    %8 = vector.load %arg3[%c0_7, %c0_8, %c0_9] : memref<5x28x120xf32, #tpu.memory_space<vmem>>, vector<1x28x120xf32>
    %9 = vector.shape_cast %8 : vector<1x28x120xf32> to vector<28x120xf32>
    %cst_10 = arith.constant dense<0.000000e+00> : vector<192x120xf32>
    %10 = tpu.matmul %3, %9, %cst_10 {dimension_numbers = #tpu.dot_dimension_numbers<[1], [0], [0], [1], [0, 0, 1, 1], [], []>} : vector<192x28xf32>, vector<28x120xf32>, vector<192x120xf32> -> vector<192x120xf32>
    %11 = arith.addf %1, %10 : vector<192x120xf32>
    %c1 = arith.constant 1 : index
    %c0_11 = arith.constant 0 : index
    %c0_12 = arith.constant 0 : index
    %12 = vector.load %arg1[%c1, %c0_11, %c0_12] : memref<28x8x28xf32, #tpu.memory_space<vmem>>, vector<24x8x28xf32>
    %13 = vector.shape_cast %12 : vector<24x8x28xf32> to vector<192x28xf32>
    %c1_13 = arith.constant 1 : index
    %c0_14 = arith.constant 0 : index
    %c0_15 = arith.constant 0 : index
    %14 = vector.load %arg2[%c1_13, %c0_14, %c0_15] : memref<5x28x120xf32, #tpu.memory_space<vmem>>, vector<1x28x120xf32>
    %15 = vector.shape_cast %14 : vector<1x28x120xf32> to vector<28x120xf32>
    %cst_16 = arith.constant dense<0.000000e+00> : vector<192x120xf32>
    %16 = tpu.matmul %13, %15, %cst_16 {dimension_numbers = #tpu.dot_dimension_numbers<[1], [0], [0], [1], [0, 0, 1, 1], [], []>} : vector<192x28xf32>, vector<28x120xf32>, vector<192x120xf32> -> vector<192x120xf32>
    %17 = arith.addf %7, %16 : vector<192x120xf32>
    %c1_17 = arith.constant 1 : index
    %c0_18 = arith.constant 0 : index
    %c0_19 = arith.constant 0 : index
    %18 = vector.load %arg3[%c1_17, %c0_18, %c0_19] : memref<5x28x120xf32, #tpu.memory_space<vmem>>, vector<1x28x120xf32>
    %19 = vector.shape_cast %18 : vector<1x28x120xf32> to vector<28x120xf32>
    %cst_20 = arith.constant dense<0.000000e+00> : vector<192x120xf32>
    %20 = tpu.matmul %13, %19, %cst_20 {dimension_numbers = #tpu.dot_dimension_numbers<[1], [0], [0], [1], [0, 0, 1, 1], [], []>} : vector<192x28xf32>, vector<28x120xf32>, vector<192x120xf32> -> vector<192x120xf32>
    %21 = arith.addf %11, %20 : vector<192x120xf32>
    %c2 = arith.constant 2 : index
    %c0_21 = arith.constant 0 : index
    %c0_22 = arith.constant 0 : index
    %22 = vector.load %arg1[%c2, %c0_21, %c0_22] : memref<28x8x28xf32, #tpu.memory_space<vmem>>, vector<24x8x28xf32>
    %23 = vector.shape_cast %22 : vector<24x8x28xf32> to vector<192x28xf32>
    %c2_23 = arith.constant 2 : index
    %c0_24 = arith.constant 0 : index
    %c0_25 = arith.constant 0 : index
    %24 = vector.load %arg2[%c2_23, %c0_24, %c0_25] : memref<5x28x120xf32, #tpu.memory_space<vmem>>, vector<1x28x120xf32>
    %25 = vector.shape_cast %24 : vector<1x28x120xf32> to vector<28x120xf32>
    %cst_26 = arith.constant dense<0.000000e+00> : vector<192x120xf32>
    %26 = tpu.matmul %23, %25, %cst_26 {dimension_numbers = #tpu.dot_dimension_numbers<[1], [0], [0], [1], [0, 0, 1, 1], [], []>} : vector<192x28xf32>, vector<28x120xf32>, vector<192x120xf32> -> vector<192x120xf32>
    %27 = arith.addf %17, %26 : vector<192x120xf32>
    %c2_27 = arith.constant 2 : index
    %c0_28 = arith.constant 0 : index
    %c0_29 = arith.constant 0 : index
    %28 = vector.load %arg3[%c2_27, %c0_28, %c0_29] : memref<5x28x120xf32, #tpu.memory_space<vmem>>, vector<1x28x120xf32>
    %29 = vector.shape_cast %28 : vector<1x28x120xf32> to vector<28x120xf32>
    %cst_30 = arith.constant dense<0.000000e+00> : vector<192x120xf32>
    %30 = tpu.matmul %23, %29, %cst_30 {dimension_numbers = #tpu.dot_dimension_numbers<[1], [0], [0], [1], [0, 0, 1, 1], [], []>} : vector<192x28xf32>, vector<28x120xf32>, vector<192x120xf32> -> vector<192x120xf32>
    %31 = arith.addf %21, %30 : vector<192x120xf32>
    %c3 = arith.constant 3 : index
    %c0_31 = arith.constant 0 : index
    %c0_32 = arith.constant 0 : index
    %32 = vector.load %arg1[%c3, %c0_31, %c0_32] : memref<28x8x28xf32, #tpu.memory_space<vmem>>, vector<24x8x28xf32>
    %33 = vector.shape_cast %32 : vector<24x8x28xf32> to vector<192x28xf32>
    %c3_33 = arith.constant 3 : index
    %c0_34 = arith.constant 0 : index
    %c0_35 = arith.constant 0 : index
    %34 = vector.load %arg2[%c3_33, %c0_34, %c0_35] : memref<5x28x120xf32, #tpu.memory_space<vmem>>, vector<1x28x120xf32>
    %35 = vector.shape_cast %34 : vector<1x28x120xf32> to vector<28x120xf32>
    %cst_36 = arith.constant dense<0.000000e+00> : vector<192x120xf32>
    %36 = tpu.matmul %33, %35, %cst_36 {dimension_numbers = #tpu.dot_dimension_numbers<[1], [0], [0], [1], [0, 0, 1, 1], [], []>} : vector<192x28xf32>, vector<28x120xf32>, vector<192x120xf32> -> vector<192x120xf32>
    %37 = arith.addf %27, %36 : vector<192x120xf32>
    %c3_37 = arith.constant 3 : index
    %c0_38 = arith.constant 0 : index
    %c0_39 = arith.constant 0 : index
    %38 = vector.load %arg3[%c3_37, %c0_38, %c0_39] : memref<5x28x120xf32, #tpu.memory_space<vmem>>, vector<1x28x120xf32>
    %39 = vector.shape_cast %38 : vector<1x28x120xf32> to vector<28x120xf32>
    %cst_40 = arith.constant dense<0.000000e+00> : vector<192x120xf32>
    %40 = tpu.matmul %33, %39, %cst_40 {dimension_numbers = #tpu.dot_dimension_numbers<[1], [0], [0], [1], [0, 0, 1, 1], [], []>} : vector<192x28xf32>, vector<28x120xf32>, vector<192x120xf32> -> vector<192x120xf32>
    %41 = arith.addf %31, %40 : vector<192x120xf32>
    %c4 = arith.constant 4 : index
    %c0_41 = arith.constant 0 : index
    %c0_42 = arith.constant 0 : index
    %42 = vector.load %arg1[%c4, %c0_41, %c0_42] : memref<28x8x28xf32, #tpu.memory_space<vmem>>, vector<24x8x28xf32>
    %43 = vector.shape_cast %42 : vector<24x8x28xf32> to vector<192x28xf32>
    %c4_43 = arith.constant 4 : index
    %c0_44 = arith.constant 0 : index
    %c0_45 = arith.constant 0 : index
    %44 = vector.load %arg2[%c4_43, %c0_44, %c0_45] : memref<5x28x120xf32, #tpu.memory_space<vmem>>, vector<1x28x120xf32>
    %45 = vector.shape_cast %44 : vector<1x28x120xf32> to vector<28x120xf32>
    %cst_46 = arith.constant dense<0.000000e+00> : vector<192x120xf32>
    %46 = tpu.matmul %43, %45, %cst_46 {dimension_numbers = #tpu.dot_dimension_numbers<[1], [0], [0], [1], [0, 0, 1, 1], [], []>} : vector<192x28xf32>, vector<28x120xf32>, vector<192x120xf32> -> vector<192x120xf32>
    %47 = arith.addf %37, %46 : vector<192x120xf32>
    %c4_47 = arith.constant 4 : index
    %c0_48 = arith.constant 0 : index
    %c0_49 = arith.constant 0 : index
    %48 = vector.load %arg3[%c4_47, %c0_48, %c0_49] : memref<5x28x120xf32, #tpu.memory_space<vmem>>, vector<1x28x120xf32>
    %49 = vector.shape_cast %48 : vector<1x28x120xf32> to vector<28x120xf32>
    %cst_50 = arith.constant dense<0.000000e+00> : vector<192x120xf32>
    %50 = tpu.matmul %43, %49, %cst_50 {dimension_numbers = #tpu.dot_dimension_numbers<[1], [0], [0], [1], [0, 0, 1, 1], [], []>} : vector<192x28xf32>, vector<28x120xf32>, vector<192x120xf32> -> vector<192x120xf32>
    %51 = arith.addf %41, %50 : vector<192x120xf32>
    %c0_51 = arith.constant 0 : index
    %c0_52 = arith.constant 0 : index
    %52 = vector.load %arg4[%c0_51, %c0_52] : memref<1x120xf32, #tpu.memory_space<vmem>>, vector<1x120xf32>
    %53 = vector.broadcast %52 : vector<1x120xf32> to vector<192x120xf32>
    %54 = arith.addf %47, %53 : vector<192x120xf32>
    %55 = vector.broadcast %52 : vector<1x120xf32> to vector<192x120xf32>
    %56 = arith.addf %51, %55 : vector<192x120xf32>
    %57 = arith.maximumf %54, %56 : vector<192x120xf32>
    %58 = vector.shape_cast %57 : vector<192x120xf32> to vector<24x8x120xf32>
    %59 = vector.extract_strided_slice %58 {offsets = [0, 0, 0], sizes = [1, 8, 120], strides = [1, 1, 1]} : vector<24x8x120xf32> to vector<1x8x120xf32>
    %60 = vector.shape_cast %59 : vector<1x8x120xf32> to vector<8x120xf32>
    %61 = vector.extract_strided_slice %58 {offsets = [1, 0, 0], sizes = [1, 8, 120], strides = [1, 1, 1]} : vector<24x8x120xf32> to vector<1x8x120xf32>
    %62 = vector.shape_cast %61 : vector<1x8x120xf32> to vector<8x120xf32>
    %63 = arith.maximumf %60, %62 : vector<8x120xf32>
    %64 = vector.extract_strided_slice %58 {offsets = [2, 0, 0], sizes = [1, 8, 120], strides = [1, 1, 1]} : vector<24x8x120xf32> to vector<1x8x120xf32>
    %65 = vector.shape_cast %64 : vector<1x8x120xf32> to vector<8x120xf32>
    %66 = vector.extract_strided_slice %58 {offsets = [3, 0, 0], sizes = [1, 8, 120], strides = [1, 1, 1]} : vector<24x8x120xf32> to vector<1x8x120xf32>
    %67 = vector.shape_cast %66 : vector<1x8x120xf32> to vector<8x120xf32>
    %68 = arith.maximumf %65, %67 : vector<8x120xf32>
    %69 = vector.extract_strided_slice %58 {offsets = [4, 0, 0], sizes = [1, 8, 120], strides = [1, 1, 1]} : vector<24x8x120xf32> to vector<1x8x120xf32>
    %70 = vector.shape_cast %69 : vector<1x8x120xf32> to vector<8x120xf32>
    %71 = vector.extract_strided_slice %58 {offsets = [5, 0, 0], sizes = [1, 8, 120], strides = [1, 1, 1]} : vector<24x8x120xf32> to vector<1x8x120xf32>
    %72 = vector.shape_cast %71 : vector<1x8x120xf32> to vector<8x120xf32>
    %73 = arith.maximumf %70, %72 : vector<8x120xf32>
    %74 = vector.extract_strided_slice %58 {offsets = [6, 0, 0], sizes = [1, 8, 120], strides = [1, 1, 1]} : vector<24x8x120xf32> to vector<1x8x120xf32>
    %75 = vector.shape_cast %74 : vector<1x8x120xf32> to vector<8x120xf32>
    %76 = vector.extract_strided_slice %58 {offsets = [7, 0, 0], sizes = [1, 8, 120], strides = [1, 1, 1]} : vector<24x8x120xf32> to vector<1x8x120xf32>
    %77 = vector.shape_cast %76 : vector<1x8x120xf32> to vector<8x120xf32>
    %78 = arith.maximumf %75, %77 : vector<8x120xf32>
    %79 = vector.extract_strided_slice %58 {offsets = [8, 0, 0], sizes = [1, 8, 120], strides = [1, 1, 1]} : vector<24x8x120xf32> to vector<1x8x120xf32>
    %80 = vector.shape_cast %79 : vector<1x8x120xf32> to vector<8x120xf32>
    %81 = vector.extract_strided_slice %58 {offsets = [9, 0, 0], sizes = [1, 8, 120], strides = [1, 1, 1]} : vector<24x8x120xf32> to vector<1x8x120xf32>
    %82 = vector.shape_cast %81 : vector<1x8x120xf32> to vector<8x120xf32>
    %83 = arith.maximumf %80, %82 : vector<8x120xf32>
    %84 = vector.extract_strided_slice %58 {offsets = [10, 0, 0], sizes = [1, 8, 120], strides = [1, 1, 1]} : vector<24x8x120xf32> to vector<1x8x120xf32>
    %85 = vector.shape_cast %84 : vector<1x8x120xf32> to vector<8x120xf32>
    %86 = vector.extract_strided_slice %58 {offsets = [11, 0, 0], sizes = [1, 8, 120], strides = [1, 1, 1]} : vector<24x8x120xf32> to vector<1x8x120xf32>
    %87 = vector.shape_cast %86 : vector<1x8x120xf32> to vector<8x120xf32>
    %88 = arith.maximumf %85, %87 : vector<8x120xf32>
    %89 = vector.extract_strided_slice %58 {offsets = [12, 0, 0], sizes = [1, 8, 120], strides = [1, 1, 1]} : vector<24x8x120xf32> to vector<1x8x120xf32>
    %90 = vector.shape_cast %89 : vector<1x8x120xf32> to vector<8x120xf32>
    %91 = vector.extract_strided_slice %58 {offsets = [13, 0, 0], sizes = [1, 8, 120], strides = [1, 1, 1]} : vector<24x8x120xf32> to vector<1x8x120xf32>
    %92 = vector.shape_cast %91 : vector<1x8x120xf32> to vector<8x120xf32>
    %93 = arith.maximumf %90, %92 : vector<8x120xf32>
    %94 = vector.extract_strided_slice %58 {offsets = [14, 0, 0], sizes = [1, 8, 120], strides = [1, 1, 1]} : vector<24x8x120xf32> to vector<1x8x120xf32>
    %95 = vector.shape_cast %94 : vector<1x8x120xf32> to vector<8x120xf32>
    %96 = vector.extract_strided_slice %58 {offsets = [15, 0, 0], sizes = [1, 8, 120], strides = [1, 1, 1]} : vector<24x8x120xf32> to vector<1x8x120xf32>
    %97 = vector.shape_cast %96 : vector<1x8x120xf32> to vector<8x120xf32>
    %98 = arith.maximumf %95, %97 : vector<8x120xf32>
    %99 = vector.extract_strided_slice %58 {offsets = [16, 0, 0], sizes = [1, 8, 120], strides = [1, 1, 1]} : vector<24x8x120xf32> to vector<1x8x120xf32>
    %100 = vector.shape_cast %99 : vector<1x8x120xf32> to vector<8x120xf32>
    %101 = vector.extract_strided_slice %58 {offsets = [17, 0, 0], sizes = [1, 8, 120], strides = [1, 1, 1]} : vector<24x8x120xf32> to vector<1x8x120xf32>
    %102 = vector.shape_cast %101 : vector<1x8x120xf32> to vector<8x120xf32>
    %103 = arith.maximumf %100, %102 : vector<8x120xf32>
    %104 = vector.extract_strided_slice %58 {offsets = [18, 0, 0], sizes = [1, 8, 120], strides = [1, 1, 1]} : vector<24x8x120xf32> to vector<1x8x120xf32>
    %105 = vector.shape_cast %104 : vector<1x8x120xf32> to vector<8x120xf32>
    %106 = vector.extract_strided_slice %58 {offsets = [19, 0, 0], sizes = [1, 8, 120], strides = [1, 1, 1]} : vector<24x8x120xf32> to vector<1x8x120xf32>
    %107 = vector.shape_cast %106 : vector<1x8x120xf32> to vector<8x120xf32>
    %108 = arith.maximumf %105, %107 : vector<8x120xf32>
    %109 = vector.extract_strided_slice %58 {offsets = [20, 0, 0], sizes = [1, 8, 120], strides = [1, 1, 1]} : vector<24x8x120xf32> to vector<1x8x120xf32>
    %110 = vector.shape_cast %109 : vector<1x8x120xf32> to vector<8x120xf32>
    %111 = vector.extract_strided_slice %58 {offsets = [21, 0, 0], sizes = [1, 8, 120], strides = [1, 1, 1]} : vector<24x8x120xf32> to vector<1x8x120xf32>
    %112 = vector.shape_cast %111 : vector<1x8x120xf32> to vector<8x120xf32>
    %113 = arith.maximumf %110, %112 : vector<8x120xf32>
    %114 = vector.extract_strided_slice %58 {offsets = [22, 0, 0], sizes = [1, 8, 120], strides = [1, 1, 1]} : vector<24x8x120xf32> to vector<1x8x120xf32>
    %115 = vector.shape_cast %114 : vector<1x8x120xf32> to vector<8x120xf32>
    %116 = vector.extract_strided_slice %58 {offsets = [23, 0, 0], sizes = [1, 8, 120], strides = [1, 1, 1]} : vector<24x8x120xf32> to vector<1x8x120xf32>
    %117 = vector.shape_cast %116 : vector<1x8x120xf32> to vector<8x120xf32>
    %118 = arith.maximumf %115, %117 : vector<8x120xf32>
    %119 = vector.shape_cast %63 : vector<8x120xf32> to vector<1x8x120xf32>
    %120 = vector.shape_cast %68 : vector<8x120xf32> to vector<1x8x120xf32>
    %121 = vector.shape_cast %73 : vector<8x120xf32> to vector<1x8x120xf32>
    %122 = vector.shape_cast %78 : vector<8x120xf32> to vector<1x8x120xf32>
    %123 = vector.shape_cast %83 : vector<8x120xf32> to vector<1x8x120xf32>
    %124 = vector.shape_cast %88 : vector<8x120xf32> to vector<1x8x120xf32>
    %125 = vector.shape_cast %93 : vector<8x120xf32> to vector<1x8x120xf32>
    %126 = vector.shape_cast %98 : vector<8x120xf32> to vector<1x8x120xf32>
    %127 = vector.shape_cast %103 : vector<8x120xf32> to vector<1x8x120xf32>
    %128 = vector.shape_cast %108 : vector<8x120xf32> to vector<1x8x120xf32>
    %129 = vector.shape_cast %113 : vector<8x120xf32> to vector<1x8x120xf32>
    %130 = vector.shape_cast %118 : vector<8x120xf32> to vector<1x8x120xf32>
    %131 = tpu.concatenate %119, %120, %121, %122, %123, %124, %125, %126, %127, %128, %129, %130 in 0 : vector<1x8x120xf32>, vector<1x8x120xf32>, vector<1x8x120xf32>, vector<1x8x120xf32>, vector<1x8x120xf32>, vector<1x8x120xf32>, vector<1x8x120xf32>, vector<1x8x120xf32>, vector<1x8x120xf32>, vector<1x8x120xf32>, vector<1x8x120xf32>, vector<1x8x120xf32> -> vector<12x8x120xf32>
    %cst_53 = arith.constant 0.000000e+00 : f32
    %132 = vector.broadcast %cst_53 : f32 to vector<12x8x120xf32>
    %133 = arith.maximumf %131, %132 : vector<12x8x120xf32>
    %cst_54 = arith.constant 0.000000e+00 : f32
    %134 = vector.broadcast %cst_54 : f32 to vector<64x80xf32>
    %cst_55 = arith.constant 0.000000e+00 : f32
    %135 = vector.broadcast %cst_55 : f32 to vector<64x80xf32>
    %136 = vector.extract_strided_slice %133 {offsets = [0, 0, 0], sizes = [8, 8, 120], strides = [1, 1, 1]} : vector<12x8x120xf32> to vector<8x8x120xf32>
    %137 = vector.shape_cast %136 : vector<8x8x120xf32> to vector<64x120xf32>
    %c0_56 = arith.constant 0 : index
    %c0_57 = arith.constant 0 : index
    %c0_58 = arith.constant 0 : index
    %138 = vector.load %arg5[%c0_56, %c0_57, %c0_58] : memref<5x120x80xf32, #tpu.memory_space<vmem>>, vector<1x120x80xf32>
    %139 = vector.shape_cast %138 : vector<1x120x80xf32> to vector<120x80xf32>
    %cst_59 = arith.constant dense<0.000000e+00> : vector<64x80xf32>
    %140 = tpu.matmul %137, %139, %cst_59 {dimension_numbers = #tpu.dot_dimension_numbers<[1], [0], [0], [1], [0, 0, 1, 1], [], []>} : vector<64x120xf32>, vector<120x80xf32>, vector<64x80xf32> -> vector<64x80xf32>
    %141 = arith.addf %134, %140 : vector<64x80xf32>
    %c0_60 = arith.constant 0 : index
    %c0_61 = arith.constant 0 : index
    %c0_62 = arith.constant 0 : index
    %142 = vector.load %arg6[%c0_60, %c0_61, %c0_62] : memref<5x120x80xf32, #tpu.memory_space<vmem>>, vector<1x120x80xf32>
    %143 = vector.shape_cast %142 : vector<1x120x80xf32> to vector<120x80xf32>
    %cst_63 = arith.constant dense<0.000000e+00> : vector<64x80xf32>
    %144 = tpu.matmul %137, %143, %cst_63 {dimension_numbers = #tpu.dot_dimension_numbers<[1], [0], [0], [1], [0, 0, 1, 1], [], []>} : vector<64x120xf32>, vector<120x80xf32>, vector<64x80xf32> -> vector<64x80xf32>
    %145 = arith.addf %135, %144 : vector<64x80xf32>
    %146 = vector.extract_strided_slice %133 {offsets = [1, 0, 0], sizes = [8, 8, 120], strides = [1, 1, 1]} : vector<12x8x120xf32> to vector<8x8x120xf32>
    %147 = vector.shape_cast %146 : vector<8x8x120xf32> to vector<64x120xf32>
    %c1_64 = arith.constant 1 : index
    %c0_65 = arith.constant 0 : index
    %c0_66 = arith.constant 0 : index
    %148 = vector.load %arg5[%c1_64, %c0_65, %c0_66] : memref<5x120x80xf32, #tpu.memory_space<vmem>>, vector<1x120x80xf32>
    %149 = vector.shape_cast %148 : vector<1x120x80xf32> to vector<120x80xf32>
    %cst_67 = arith.constant dense<0.000000e+00> : vector<64x80xf32>
    %150 = tpu.matmul %147, %149, %cst_67 {dimension_numbers = #tpu.dot_dimension_numbers<[1], [0], [0], [1], [0, 0, 1, 1], [], []>} : vector<64x120xf32>, vector<120x80xf32>, vector<64x80xf32> -> vector<64x80xf32>
    %151 = arith.addf %141, %150 : vector<64x80xf32>
    %c1_68 = arith.constant 1 : index
    %c0_69 = arith.constant 0 : index
    %c0_70 = arith.constant 0 : index
    %152 = vector.load %arg6[%c1_68, %c0_69, %c0_70] : memref<5x120x80xf32, #tpu.memory_space<vmem>>, vector<1x120x80xf32>
    %153 = vector.shape_cast %152 : vector<1x120x80xf32> to vector<120x80xf32>
    %cst_71 = arith.constant dense<0.000000e+00> : vector<64x80xf32>
    %154 = tpu.matmul %147, %153, %cst_71 {dimension_numbers = #tpu.dot_dimension_numbers<[1], [0], [0], [1], [0, 0, 1, 1], [], []>} : vector<64x120xf32>, vector<120x80xf32>, vector<64x80xf32> -> vector<64x80xf32>
    %155 = arith.addf %145, %154 : vector<64x80xf32>
    %156 = vector.extract_strided_slice %133 {offsets = [2, 0, 0], sizes = [8, 8, 120], strides = [1, 1, 1]} : vector<12x8x120xf32> to vector<8x8x120xf32>
    %157 = vector.shape_cast %156 : vector<8x8x120xf32> to vector<64x120xf32>
    %c2_72 = arith.constant 2 : index
    %c0_73 = arith.constant 0 : index
    %c0_74 = arith.constant 0 : index
    %158 = vector.load %arg5[%c2_72, %c0_73, %c0_74] : memref<5x120x80xf32, #tpu.memory_space<vmem>>, vector<1x120x80xf32>
    %159 = vector.shape_cast %158 : vector<1x120x80xf32> to vector<120x80xf32>
    %cst_75 = arith.constant dense<0.000000e+00> : vector<64x80xf32>
    %160 = tpu.matmul %157, %159, %cst_75 {dimension_numbers = #tpu.dot_dimension_numbers<[1], [0], [0], [1], [0, 0, 1, 1], [], []>} : vector<64x120xf32>, vector<120x80xf32>, vector<64x80xf32> -> vector<64x80xf32>
    %161 = arith.addf %151, %160 : vector<64x80xf32>
    %c2_76 = arith.constant 2 : index
    %c0_77 = arith.constant 0 : index
    %c0_78 = arith.constant 0 : index
    %162 = vector.load %arg6[%c2_76, %c0_77, %c0_78] : memref<5x120x80xf32, #tpu.memory_space<vmem>>, vector<1x120x80xf32>
    %163 = vector.shape_cast %162 : vector<1x120x80xf32> to vector<120x80xf32>
    %cst_79 = arith.constant dense<0.000000e+00> : vector<64x80xf32>
    %164 = tpu.matmul %157, %163, %cst_79 {dimension_numbers = #tpu.dot_dimension_numbers<[1], [0], [0], [1], [0, 0, 1, 1], [], []>} : vector<64x120xf32>, vector<120x80xf32>, vector<64x80xf32> -> vector<64x80xf32>
    %165 = arith.addf %155, %164 : vector<64x80xf32>
    %166 = vector.extract_strided_slice %133 {offsets = [3, 0, 0], sizes = [8, 8, 120], strides = [1, 1, 1]} : vector<12x8x120xf32> to vector<8x8x120xf32>
    %167 = vector.shape_cast %166 : vector<8x8x120xf32> to vector<64x120xf32>
    %c3_80 = arith.constant 3 : index
    %c0_81 = arith.constant 0 : index
    %c0_82 = arith.constant 0 : index
    %168 = vector.load %arg5[%c3_80, %c0_81, %c0_82] : memref<5x120x80xf32, #tpu.memory_space<vmem>>, vector<1x120x80xf32>
    %169 = vector.shape_cast %168 : vector<1x120x80xf32> to vector<120x80xf32>
    %cst_83 = arith.constant dense<0.000000e+00> : vector<64x80xf32>
    %170 = tpu.matmul %167, %169, %cst_83 {dimension_numbers = #tpu.dot_dimension_numbers<[1], [0], [0], [1], [0, 0, 1, 1], [], []>} : vector<64x120xf32>, vector<120x80xf32>, vector<64x80xf32> -> vector<64x80xf32>
    %171 = arith.addf %161, %170 : vector<64x80xf32>
    %c3_84 = arith.constant 3 : index
    %c0_85 = arith.constant 0 : index
    %c0_86 = arith.constant 0 : index
    %172 = vector.load %arg6[%c3_84, %c0_85, %c0_86] : memref<5x120x80xf32, #tpu.memory_space<vmem>>, vector<1x120x80xf32>
    %173 = vector.shape_cast %172 : vector<1x120x80xf32> to vector<120x80xf32>
    %cst_87 = arith.constant dense<0.000000e+00> : vector<64x80xf32>
    %174 = tpu.matmul %167, %173, %cst_87 {dimension_numbers = #tpu.dot_dimension_numbers<[1], [0], [0], [1], [0, 0, 1, 1], [], []>} : vector<64x120xf32>, vector<120x80xf32>, vector<64x80xf32> -> vector<64x80xf32>
    %175 = arith.addf %165, %174 : vector<64x80xf32>
    %176 = vector.extract_strided_slice %133 {offsets = [4, 0, 0], sizes = [8, 8, 120], strides = [1, 1, 1]} : vector<12x8x120xf32> to vector<8x8x120xf32>
    %177 = vector.shape_cast %176 : vector<8x8x120xf32> to vector<64x120xf32>
    %c4_88 = arith.constant 4 : index
    %c0_89 = arith.constant 0 : index
    %c0_90 = arith.constant 0 : index
    %178 = vector.load %arg5[%c4_88, %c0_89, %c0_90] : memref<5x120x80xf32, #tpu.memory_space<vmem>>, vector<1x120x80xf32>
    %179 = vector.shape_cast %178 : vector<1x120x80xf32> to vector<120x80xf32>
    %cst_91 = arith.constant dense<0.000000e+00> : vector<64x80xf32>
    %180 = tpu.matmul %177, %179, %cst_91 {dimension_numbers = #tpu.dot_dimension_numbers<[1], [0], [0], [1], [0, 0, 1, 1], [], []>} : vector<64x120xf32>, vector<120x80xf32>, vector<64x80xf32> -> vector<64x80xf32>
    %181 = arith.addf %171, %180 : vector<64x80xf32>
    %c4_92 = arith.constant 4 : index
    %c0_93 = arith.constant 0 : index
    %c0_94 = arith.constant 0 : index
    %182 = vector.load %arg6[%c4_92, %c0_93, %c0_94] : memref<5x120x80xf32, #tpu.memory_space<vmem>>, vector<1x120x80xf32>
    %183 = vector.shape_cast %182 : vector<1x120x80xf32> to vector<120x80xf32>
    %cst_95 = arith.constant dense<0.000000e+00> : vector<64x80xf32>
    %184 = tpu.matmul %177, %183, %cst_95 {dimension_numbers = #tpu.dot_dimension_numbers<[1], [0], [0], [1], [0, 0, 1, 1], [], []>} : vector<64x120xf32>, vector<120x80xf32>, vector<64x80xf32> -> vector<64x80xf32>
    %185 = arith.addf %175, %184 : vector<64x80xf32>
    %c0_96 = arith.constant 0 : index
    %c0_97 = arith.constant 0 : index
    %186 = vector.load %arg7[%c0_96, %c0_97] : memref<1x80xf32, #tpu.memory_space<vmem>>, vector<1x80xf32>
    %187 = vector.broadcast %186 : vector<1x80xf32> to vector<64x80xf32>
    %188 = arith.addf %181, %187 : vector<64x80xf32>
    %189 = vector.broadcast %186 : vector<1x80xf32> to vector<64x80xf32>
    %190 = arith.addf %185, %189 : vector<64x80xf32>
    %191 = arith.maximumf %188, %190 : vector<64x80xf32>
    %192 = vector.shape_cast %191 : vector<64x80xf32> to vector<8x8x80xf32>
    %cst_98 = arith.constant 0.000000e+00 : f32
    %193 = vector.broadcast %cst_98 : f32 to vector<8x10xf32>
    %194 = vector.extract_strided_slice %192 {offsets = [0, 0, 0], sizes = [1, 8, 80], strides = [1, 1, 1]} : vector<8x8x80xf32> to vector<1x8x80xf32>
    %195 = vector.shape_cast %194 : vector<1x8x80xf32> to vector<8x80xf32>
    %196 = vector.extract_strided_slice %192 {offsets = [1, 0, 0], sizes = [1, 8, 80], strides = [1, 1, 1]} : vector<8x8x80xf32> to vector<1x8x80xf32>
    %197 = vector.shape_cast %196 : vector<1x8x80xf32> to vector<8x80xf32>
    %198 = arith.maximumf %195, %197 : vector<8x80xf32>
    %cst_99 = arith.constant 0.000000e+00 : f32
    %199 = vector.broadcast %cst_99 : f32 to vector<8x80xf32>
    %200 = arith.maximumf %198, %199 : vector<8x80xf32>
    %c0_100 = arith.constant 0 : index
    %c0_101 = arith.constant 0 : index
    %c0_102 = arith.constant 0 : index
    %201 = vector.load %arg8[%c0_100, %c0_101, %c0_102] : memref<4x80x10xf32, #tpu.memory_space<vmem>>, vector<1x80x10xf32>
    %202 = vector.shape_cast %201 : vector<1x80x10xf32> to vector<80x10xf32>
    %cst_103 = arith.constant dense<0.000000e+00> : vector<8x10xf32>
    %203 = tpu.matmul %200, %202, %cst_103 {dimension_numbers = #tpu.dot_dimension_numbers<[1], [0], [0], [1], [0, 0, 1, 1], [], []>} : vector<8x80xf32>, vector<80x10xf32>, vector<8x10xf32> -> vector<8x10xf32>
    %204 = arith.addf %193, %203 : vector<8x10xf32>
    %205 = vector.extract_strided_slice %192 {offsets = [2, 0, 0], sizes = [1, 8, 80], strides = [1, 1, 1]} : vector<8x8x80xf32> to vector<1x8x80xf32>
    %206 = vector.shape_cast %205 : vector<1x8x80xf32> to vector<8x80xf32>
    %207 = vector.extract_strided_slice %192 {offsets = [3, 0, 0], sizes = [1, 8, 80], strides = [1, 1, 1]} : vector<8x8x80xf32> to vector<1x8x80xf32>
    %208 = vector.shape_cast %207 : vector<1x8x80xf32> to vector<8x80xf32>
    %209 = arith.maximumf %206, %208 : vector<8x80xf32>
    %cst_104 = arith.constant 0.000000e+00 : f32
    %210 = vector.broadcast %cst_104 : f32 to vector<8x80xf32>
    %211 = arith.maximumf %209, %210 : vector<8x80xf32>
    %c1_105 = arith.constant 1 : index
    %c0_106 = arith.constant 0 : index
    %c0_107 = arith.constant 0 : index
    %212 = vector.load %arg8[%c1_105, %c0_106, %c0_107] : memref<4x80x10xf32, #tpu.memory_space<vmem>>, vector<1x80x10xf32>
    %213 = vector.shape_cast %212 : vector<1x80x10xf32> to vector<80x10xf32>
    %cst_108 = arith.constant dense<0.000000e+00> : vector<8x10xf32>
    %214 = tpu.matmul %211, %213, %cst_108 {dimension_numbers = #tpu.dot_dimension_numbers<[1], [0], [0], [1], [0, 0, 1, 1], [], []>} : vector<8x80xf32>, vector<80x10xf32>, vector<8x10xf32> -> vector<8x10xf32>
    %215 = arith.addf %204, %214 : vector<8x10xf32>
    %216 = vector.extract_strided_slice %192 {offsets = [4, 0, 0], sizes = [1, 8, 80], strides = [1, 1, 1]} : vector<8x8x80xf32> to vector<1x8x80xf32>
    %217 = vector.shape_cast %216 : vector<1x8x80xf32> to vector<8x80xf32>
    %218 = vector.extract_strided_slice %192 {offsets = [5, 0, 0], sizes = [1, 8, 80], strides = [1, 1, 1]} : vector<8x8x80xf32> to vector<1x8x80xf32>
    %219 = vector.shape_cast %218 : vector<1x8x80xf32> to vector<8x80xf32>
    %220 = arith.maximumf %217, %219 : vector<8x80xf32>
    %cst_109 = arith.constant 0.000000e+00 : f32
    %221 = vector.broadcast %cst_109 : f32 to vector<8x80xf32>
    %222 = arith.maximumf %220, %221 : vector<8x80xf32>
    %c2_110 = arith.constant 2 : index
    %c0_111 = arith.constant 0 : index
    %c0_112 = arith.constant 0 : index
    %223 = vector.load %arg8[%c2_110, %c0_111, %c0_112] : memref<4x80x10xf32, #tpu.memory_space<vmem>>, vector<1x80x10xf32>
    %224 = vector.shape_cast %223 : vector<1x80x10xf32> to vector<80x10xf32>
    %cst_113 = arith.constant dense<0.000000e+00> : vector<8x10xf32>
    %225 = tpu.matmul %222, %224, %cst_113 {dimension_numbers = #tpu.dot_dimension_numbers<[1], [0], [0], [1], [0, 0, 1, 1], [], []>} : vector<8x80xf32>, vector<80x10xf32>, vector<8x10xf32> -> vector<8x10xf32>
    %226 = arith.addf %215, %225 : vector<8x10xf32>
    %227 = vector.extract_strided_slice %192 {offsets = [6, 0, 0], sizes = [1, 8, 80], strides = [1, 1, 1]} : vector<8x8x80xf32> to vector<1x8x80xf32>
    %228 = vector.shape_cast %227 : vector<1x8x80xf32> to vector<8x80xf32>
    %229 = vector.extract_strided_slice %192 {offsets = [7, 0, 0], sizes = [1, 8, 80], strides = [1, 1, 1]} : vector<8x8x80xf32> to vector<1x8x80xf32>
    %230 = vector.shape_cast %229 : vector<1x8x80xf32> to vector<8x80xf32>
    %231 = arith.maximumf %228, %230 : vector<8x80xf32>
    %cst_114 = arith.constant 0.000000e+00 : f32
    %232 = vector.broadcast %cst_114 : f32 to vector<8x80xf32>
    %233 = arith.maximumf %231, %232 : vector<8x80xf32>
    %c3_115 = arith.constant 3 : index
    %c0_116 = arith.constant 0 : index
    %c0_117 = arith.constant 0 : index
    %234 = vector.load %arg8[%c3_115, %c0_116, %c0_117] : memref<4x80x10xf32, #tpu.memory_space<vmem>>, vector<1x80x10xf32>
    %235 = vector.shape_cast %234 : vector<1x80x10xf32> to vector<80x10xf32>
    %cst_118 = arith.constant dense<0.000000e+00> : vector<8x10xf32>
    %236 = tpu.matmul %233, %235, %cst_118 {dimension_numbers = #tpu.dot_dimension_numbers<[1], [0], [0], [1], [0, 0, 1, 1], [], []>} : vector<8x80xf32>, vector<80x10xf32>, vector<8x10xf32> -> vector<8x10xf32>
    %237 = arith.addf %226, %236 : vector<8x10xf32>
    %c0_119 = arith.constant 0 : index
    %c0_120 = arith.constant 0 : index
    %238 = vector.load %arg9[%c0_119, %c0_120] : memref<1x10xf32, #tpu.memory_space<vmem>>, vector<1x10xf32>
    %239 = vector.broadcast %238 : vector<1x10xf32> to vector<8x10xf32>
    %240 = arith.addf %237, %239 : vector<8x10xf32>
    %c0_121 = arith.constant 0 : index
    %c0_122 = arith.constant 0 : index
    %241 = vector.load %arg10[%c0_121, %c0_122] : memref<8x10xf32, #tpu.memory_space<vmem>>, vector<8x10xf32>
    tpu.vector_store %arg10[%c0_121, %c0_122], %240 {strides = array<i32>} : memref<8x10xf32, #tpu.memory_space<vmem>>, vector<8x10xf32>,
    return
  }
  func.func @transform_0(%arg0: i32) -> (i32, i32, i32) {
    %c0_i32 = arith.constant 0 : i32
    %c0_i32_0 = arith.constant 0 : i32
    %c0_i32_1 = arith.constant 0 : i32
    return %c0_i32, %arg0, %c0_i32_0 : i32, i32, i32
  }
  func.func @transform_1(%arg0: i32) -> (i32, i32, i32) {
    %c0_i32 = arith.constant 0 : i32
    %c0_i32_0 = arith.constant 0 : i32
    %c0_i32_1 = arith.constant 0 : i32
    %c0_i32_2 = arith.constant 0 : i32
    return %c0_i32, %c0_i32_0, %c0_i32_1 : i32, i32, i32
  }
  func.func @transform_2(%arg0: i32) -> (i32, i32, i32) {
    %c0_i32 = arith.constant 0 : i32
    %c0_i32_0 = arith.constant 0 : i32
    %c0_i32_1 = arith.constant 0 : i32
    %c0_i32_2 = arith.constant 0 : i32
    return %c0_i32, %c0_i32_0, %c0_i32_1 : i32, i32, i32
  }
  func.func @transform_3(%arg0: i32) -> (i32, i32) {
    %c0_i32 = arith.constant 0 : i32
    %c0_i32_0 = arith.constant 0 : i32
    %c0_i32_1 = arith.constant 0 : i32
    return %c0_i32, %c0_i32_0 : i32, i32
  }
  func.func @transform_4(%arg0: i32) -> (i32, i32, i32) {
    %c0_i32 = arith.constant 0 : i32
    %c0_i32_0 = arith.constant 0 : i32
    %c0_i32_1 = arith.constant 0 : i32
    %c0_i32_2 = arith.constant 0 : i32
    return %c0_i32, %c0_i32_0, %c0_i32_1 : i32, i32, i32
  }
  func.func @transform_5(%arg0: i32) -> (i32, i32, i32) {
    %c0_i32 = arith.constant 0 : i32
    %c0_i32_0 = arith.constant 0 : i32
    %c0_i32_1 = arith.constant 0 : i32
    %c0_i32_2 = arith.constant 0 : i32
    return %c0_i32, %c0_i32_0, %c0_i32_1 : i32, i32, i32
  }
  func.func @transform_6(%arg0: i32) -> (i32, i32) {
    %c0_i32 = arith.constant 0 : i32
    %c0_i32_0 = arith.constant 0 : i32
    %c0_i32_1 = arith.constant 0 : i32
    return %c0_i32, %c0_i32_0 : i32, i32
  }
  func.func @transform_7(%arg0: i32) -> (i32, i32, i32) {
    %c0_i32 = arith.constant 0 : i32
    %c0_i32_0 = arith.constant 0 : i32
    %c0_i32_1 = arith.constant 0 : i32
    %c0_i32_2 = arith.constant 0 : i32
    return %c0_i32, %c0_i32_0, %c0_i32_1 : i32, i32, i32
  }
  func.func @transform_8(%arg0: i32) -> (i32, i32) {
    %c0_i32 = arith.constant 0 : i32
    %c0_i32_0 = arith.constant 0 : i32
    %c0_i32_1 = arith.constant 0 : i32
    return %c0_i32, %c0_i32_0 : i32, i32
  }
  func.func @transform_9(%arg0: i32) -> (i32, i32) {
    %c0_i32 = arith.constant 0 : i32
    %c0_i32_0 = arith.constant 0 : i32
    return %arg0, %c0_i32 : i32, i32
  }
}

</mosaic_0001>

<llo_original>
// kernel: cnn_forward.1
$region0: #{cnn_forward.1}
  #allocation0 [shape = 'u32[]', space=smem, size = 0x4, offset = 0x4, fixed_abs, tag = 'smem constant byte address 0x4 - core index']
  #allocation1 [shape = 'u32[72,128]{1,0:T(1,128)}', space=vmem, size = 0x9000, scoped, tag = 'internal scratch']
  %s0 = inlined_call_operand.vmem [shape: f32[28,8,28], index: 0, kind: input, shape index: {}]
  %s1 = inlined_call_operand.vmem [shape: f32[5,28,120], index: 1, kind: input, shape index: {}]
  %s2 = inlined_call_operand.vmem [shape: f32[5,28,120], index: 2, kind: input, shape index: {}]
  %s3 = inlined_call_operand.vmem [shape: f32[1,120], index: 3, kind: input, shape index: {}]
  %s4 = inlined_call_operand.vmem [shape: f32[5,120,80], index: 4, kind: input, shape index: {}]
  %s5 = inlined_call_operand.vmem [shape: f32[5,120,80], index: 5, kind: input, shape index: {}]
  %s6 = inlined_call_operand.vmem [shape: f32[1,80], index: 6, kind: input, shape index: {}]
  %s7 = inlined_call_operand.vmem [shape: f32[4,80,10], index: 7, kind: input, shape index: {}]
  %s8 = inlined_call_operand.vmem [shape: f32[1,10], index: 8, kind: input, shape index: {}]
  %s9 = inlined_call_operand.vmem [shape: f32[8,10], index: 9, kind: output, shape index: {}]
  %s10 = sld [smem:[#allocation0]]
  $region46: #{cnn_forward.1} parent=0
    _
  %s12 = ssub.s32 1, %s10
  %s13 = scalar_select 0, %s12, %s10
  // Predicated region
  $region2: #{cnn_forward.1} parent=0 // pred_check
    _
  $region3: #{cnn_forward.1} parent=0 // pred_check_branch
    %15 = sbr.rel (0) target = $region5
  $region4: #{cnn_forward.1} parent=0 // pred_region
    _
  $region5: #{cnn_forward.1} parent=0 // pred_fallthru
    _
  // Predicated region
  $region6: #{cnn_forward.1} parent=0 // pred_check
    _
  $region7: #{cnn_forward.1} parent=0 // pred_check_branch
    %17 = sbr.rel (0) target = $region9
  $region8: #{cnn_forward.1} parent=0 // pred_region
    _
  $region9: #{cnn_forward.1} parent=0 // pred_fallthru
    _
  // Predicated region
  $region10: #{cnn_forward.1} parent=0 // pred_check
    _
  $region11: #{cnn_forward.1} parent=0 // pred_check_branch
    %19 = sbr.rel (0) target = $region13
  $region12: #{cnn_forward.1} parent=0 // pred_region
    _
  $region13: #{cnn_forward.1} parent=0 // pred_fallthru
    _
  // Predicated region
  $region14: #{cnn_forward.1} parent=0 // pred_check
    _
  $region15: #{cnn_forward.1} parent=0 // pred_check_branch
    %21 = sbr.rel (0) target = $region17
  $region16: #{cnn_forward.1} parent=0 // pred_region
    _
  $region17: #{cnn_forward.1} parent=0 // pred_fallthru
    _
  // Predicated region
  $region18: #{cnn_forward.1} parent=0 // pred_check
    _
  $region19: #{cnn_forward.1} parent=0 // pred_check_branch
    %23 = sbr.rel (0) target = $region21
  $region20: #{cnn_forward.1} parent=0 // pred_region
    _
  $region21: #{cnn_forward.1} parent=0 // pred_fallthru
    _
  // Predicated region
  $region22: #{cnn_forward.1} parent=0 // pred_check
    _
  $region23: #{cnn_forward.1} parent=0 // pred_check_branch
    %25 = sbr.rel (0) target = $region25
  $region24: #{cnn_forward.1} parent=0 // pred_region
    _
  $region25: #{cnn_forward.1} parent=0 // pred_fallthru
    _
  // Predicated region
  $region26: #{cnn_forward.1} parent=0 // pred_check
    _
  $region27: #{cnn_forward.1} parent=0 // pred_check_branch
    %27 = sbr.rel (0) target = $region29
  $region28: #{cnn_forward.1} parent=0 // pred_region
    _
  $region29: #{cnn_forward.1} parent=0 // pred_fallthru
    _
  // Predicated region
  $region30: #{cnn_forward.1} parent=0 // pred_check
    _
  $region31: #{cnn_forward.1} parent=0 // pred_check_branch
    %29 = sbr.rel (0) target = $region33
  $region32: #{cnn_forward.1} parent=0 // pred_region
    _
  $region33: #{cnn_forward.1} parent=0 // pred_fallthru
    _
  // Predicated region
  $region34: #{cnn_forward.1} parent=0 // pred_check
    _
  $region35: #{cnn_forward.1} parent=0 // pred_check_branch
    %31 = sbr.rel (0) target = $region37
  $region36: #{cnn_forward.1} parent=0 // pred_region
    _
  $region37: #{cnn_forward.1} parent=0 // pred_fallthru
    _
  %v32 = vld [vmem:[%s0] sm:$0xff]
  %v33 = vld [vmem:[%s0 + $0x8] sm:$0xff]
  %v34 = vld [vmem:[%s0 + $0x10] sm:$0xff]
  %v35 = vld [vmem:[%s0 + $0x18] sm:$0xff]
  %v36 = vld [vmem:[%s0 + $0x20] sm:$0xff]
  %v37 = vld [vmem:[%s0 + $0x28] sm:$0xff]
  %v38 = vld [vmem:[%s0 + $0x30] sm:$0xff]
  %v39 = vld [vmem:[%s0 + $0x38] sm:$0xff]
  %v40 = vld [vmem:[%s0 + $0x40] sm:$0xff]
  %v41 = vld [vmem:[%s0 + $0x48] sm:$0xff]
  %v42 = vld [vmem:[%s0 + $0x50] sm:$0xff]
  %v43 = vld [vmem:[%s0 + $0x58] sm:$0xff]
  %v44 = vld [vmem:[%s0 + $0x60] sm:$0xff]
  %v45 = vld [vmem:[%s0 + $0x68] sm:$0xff]
  %v46 = vld [vmem:[%s0 + $0x70] sm:$0xff]
  %v47 = vld [vmem:[%s0 + $0x78] sm:$0xff]
  %v48 = vld [vmem:[%s0 + $0x80] sm:$0xff]
  %v49 = vld [vmem:[%s0 + $0x88] sm:$0xff]
  %v50 = vld [vmem:[%s0 + $0x90] sm:$0xff]
  %v51 = vld [vmem:[%s0 + $0x98] sm:$0xff]
  %v52 = vld [vmem:[%s0 + $0xa0] sm:$0xff]
  %v53 = vld [vmem:[%s0 + $0xa8] sm:$0xff]
  %v54 = vld [vmem:[%s0 + $0xb0] sm:$0xff]
  %v55 = vld [vmem:[%s0 + $0xb8] sm:$0xff]
  %v56 = vld [vmem:[%s1] sm:$0xff]
  %v57 = vld [vmem:[%s1 + $0x8] sm:$0xff]
  %v58 = vld [vmem:[%s1 + $0x10] sm:$0xff]
  %v59 = vld [vmem:[%s1 + $0x18] sm:$0xf]
  %v60 = vld [vmem:[%s2] sm:$0xff]
  %v61 = vld [vmem:[%s2 + $0x8] sm:$0xff]
  %v62 = vld [vmem:[%s2 + $0x10] sm:$0xff]
  %v63 = vld [vmem:[%s2 + $0x18] sm:$0xf]
  %s64 = scalar_lea.vmem %s0, 8
  %v65 = vld [vmem:[%s64] sm:$0xff]
  %v66 = vld [vmem:[%s64 + $0x8] sm:$0xff]
  %v67 = vld [vmem:[%s64 + $0x10] sm:$0xff]
  %v68 = vld [vmem:[%s64 + $0x18] sm:$0xff]
  %v69 = vld [vmem:[%s64 + $0x20] sm:$0xff]
  %v70 = vld [vmem:[%s64 + $0x28] sm:$0xff]
  %v71 = vld [vmem:[%s64 + $0x30] sm:$0xff]
  %v72 = vld [vmem:[%s64 + $0x38] sm:$0xff]
  %v73 = vld [vmem:[%s64 + $0x40] sm:$0xff]
  %v74 = vld [vmem:[%s64 + $0x48] sm:$0xff]
  %v75 = vld [vmem:[%s64 + $0x50] sm:$0xff]
  %v76 = vld [vmem:[%s64 + $0x58] sm:$0xff]
  %v77 = vld [vmem:[%s64 + $0x60] sm:$0xff]
  %v78 = vld [vmem:[%s64 + $0x68] sm:$0xff]
  %v79 = vld [vmem:[%s64 + $0x70] sm:$0xff]
  %v80 = vld [vmem:[%s64 + $0x78] sm:$0xff]
  %v81 = vld [vmem:[%s64 + $0x80] sm:$0xff]
  %v82 = vld [vmem:[%s64 + $0x88] sm:$0xff]
  %v83 = vld [vmem:[%s64 + $0x90] sm:$0xff]
  %v84 = vld [vmem:[%s64 + $0x98] sm:$0xff]
  %v85 = vld [vmem:[%s64 + $0xa0] sm:$0xff]
  %v86 = vld [vmem:[%s64 + $0xa8] sm:$0xff]
  %v87 = vld [vmem:[%s64 + $0xb0] sm:$0xff]
  %v88 = vld [vmem:[%s64 + $0xb8] sm:$0xff]
  %s89 = scalar_lea.vmem %s1, 32
  %v90 = vld [vmem:[%s89] sm:$0xff]
  %v91 = vld [vmem:[%s89 + $0x8] sm:$0xff]
  %v92 = vld [vmem:[%s89 + $0x10] sm:$0xff]
  %v93 = vld [vmem:[%s89 + $0x18] sm:$0xf]
  %vm94 = vcmask 228352
  %v96 = vsel %vm94, %v65, 0
  %v99 = vsel %vm94, %v66, 0
  %v102 = vsel %vm94, %v67, 0
  %v105 = vsel %vm94, %v68, 0
  %v108 = vsel %vm94, %v69, 0
  %v111 = vsel %vm94, %v70, 0
  %v114 = vsel %vm94, %v71, 0
  %v117 = vsel %vm94, %v72, 0
  %v120 = vsel %vm94, %v73, 0
  %v123 = vsel %vm94, %v74, 0
  %v126 = vsel %vm94, %v75, 0
  %v129 = vsel %vm94, %v76, 0
  %v132 = vsel %vm94, %v77, 0
  %v135 = vsel %vm94, %v78, 0
  %v138 = vsel %vm94, %v79, 0
  %v141 = vsel %vm94, %v80, 0
  %v144 = vsel %vm94, %v81, 0
  %v147 = vsel %vm94, %v82, 0
  %v150 = vsel %vm94, %v83, 0
  %v153 = vsel %vm94, %v84, 0
  %v156 = vsel %vm94, %v85, 0
  %v159 = vsel %vm94, %v86, 0
  %v162 = vsel %vm94, %v87, 0
  %v165 = vsel %vm94, %v88, 0
  %vm167 = vcmask 1043456
  %v169 = vsel %vm167, %v93, 0
  %171 = vmatpush.msra.mxu0 0.0
  %172 = vmatpush.msra.mxu0 0.0
  %173 = vmatpush.msra.mxu0 0.0
  %174 = vmatpush.msra.mxu0 0.0
  %175 = vmatpush.msra.mxu0 0.0
  %176 = vmatpush.msra.mxu0 0.0
  %177 = vmatpush.msra.mxu0 0.0
  %178 = vmatpush.msra.mxu0 0.0
  %179 = vmatpush.msra.mxu0 0.0
  %180 = vmatpush.msra.mxu0 0.0
  %181 = vmatpush.msra.mxu0 0.0
  %182 = vmatpush.msra.mxu0 0.0
  %183 = vmatpush.msra.mxu0 %v169
  %184 = vmatpush.msra.mxu0 %v92
  %185 = vmatpush.msra.mxu0 %v91
  %186 = vmatpush.msra.mxu0 %v90
  %187 = vmatmul.f32.gmra.mxu0 %v96
  %v188 = vpop.f32.mrf.mxu0
  %v189 = vadd.f32 0.0, %v188
  %190 = vmatmul.f32.gmra.mxu0 %v99
  %v191 = vpop.f32.mrf.mxu0
  %v192 = vadd.f32 0.0, %v191
  %193 = vmatmul.f32.gmra.mxu0 %v102
  %v194 = vpop.f32.mrf.mxu0
  %v195 = vadd.f32 0.0, %v194
  %196 = vmatmul.f32.gmra.mxu0 %v105
  %v197 = vpop.f32.mrf.mxu0
  %v198 = vadd.f32 0.0, %v197
  %199 = vmatmul.f32.gmra.mxu0 %v108
  %v200 = vpop.f32.mrf.mxu0
  %v201 = vadd.f32 0.0, %v200
  %202 = vmatmul.f32.gmra.mxu0 %v111
  %v203 = vpop.f32.mrf.mxu0
  %v204 = vadd.f32 0.0, %v203
  %205 = vmatmul.f32.gmra.mxu0 %v114
  %v206 = vpop.f32.mrf.mxu0
  %v207 = vadd.f32 0.0, %v206
  %208 = vmatmul.f32.gmra.mxu0 %v117
  %v209 = vpop.f32.mrf.mxu0
  %v210 = vadd.f32 0.0, %v209
  %211 = vmatmul.f32.gmra.mxu0 %v120
  %v212 = vpop.f32.mrf.mxu0
  %v213 = vadd.f32 0.0, %v212
  %214 = vmatmul.f32.gmra.mxu0 %v123
  %v215 = vpop.f32.mrf.mxu0
  %v216 = vadd.f32 0.0, %v215
  %217 = vmatmul.f32.gmra.mxu0 %v126
  %v218 = vpop.f32.mrf.mxu0
  %v219 = vadd.f32 0.0, %v218
  %220 = vmatmul.f32.gmra.mxu0 %v129
  %v221 = vpop.f32.mrf.mxu0
  %v222 = vadd.f32 0.0, %v221
  %223 = vmatmul.f32.gmra.mxu0 %v132
  %v224 = vpop.f32.mrf.mxu0
  %v225 = vadd.f32 0.0, %v224
  %226 = vmatmul.f32.gmra.mxu0 %v135
  %v227 = vpop.f32.mrf.mxu0
  %v228 = vadd.f32 0.0, %v227
  %229 = vmatmul.f32.gmra.mxu0 %v138
  %v230 = vpop.f32.mrf.mxu0
  %v231 = vadd.f32 0.0, %v230
  %232 = vmatmul.f32.gmra.mxu0 %v141
  %v233 = vpop.f32.mrf.mxu0
  %v234 = vadd.f32 0.0, %v233
  %235 = vmatmul.f32.gmra.mxu0 %v144
  %v236 = vpop.f32.mrf.mxu0
  %v237 = vadd.f32 0.0, %v236
  %238 = vmatmul.f32.gmra.mxu0 %v147
  %v239 = vpop.f32.mrf.mxu0
  %v240 = vadd.f32 0.0, %v239
  %241 = vmatmul.f32.gmra.mxu0 %v150
  %v242 = vpop.f32.mrf.mxu0
  %v243 = vadd.f32 0.0, %v242
  %244 = vmatmul.f32.gmra.mxu0 %v153
  %v245 = vpop.f32.mrf.mxu0
  %v246 = vadd.f32 0.0, %v245
  %247 = vmatmul.f32.gmra.mxu0 %v156
  %v248 = vpop.f32.mrf.mxu0
  %v249 = vadd.f32 0.0, %v248
  %250 = vmatmul.f32.gmra.mxu0 %v159
  %v251 = vpop.f32.mrf.mxu0
  %v252 = vadd.f32 0.0, %v251
  %253 = vmatmul.f32.gmra.mxu0 %v162
  %v254 = vpop.f32.mrf.mxu0
  %v255 = vadd.f32 0.0, %v254
  %256 = vmatmul.f32.gmra.mxu0 %v165
  %v257 = vpop.f32.mrf.mxu0
  %v258 = vadd.f32 0.0, %v257
  %259 = vdwg.mxu0
  %v261 = vsel %vm94, %v32, 0
  %v264 = vsel %vm94, %v33, 0
  %v267 = vsel %vm94, %v34, 0
  %v270 = vsel %vm94, %v35, 0
  %v273 = vsel %vm94, %v36, 0
  %v276 = vsel %vm94, %v37, 0
  %v279 = vsel %vm94, %v38, 0
  %v282 = vsel %vm94, %v39, 0
  %v285 = vsel %vm94, %v40, 0
  %v288 = vsel %vm94, %v41, 0
  %v291 = vsel %vm94, %v42, 0
  %v294 = vsel %vm94, %v43, 0
  %v297 = vsel %vm94, %v44, 0
  %v300 = vsel %vm94, %v45, 0
  %v303 = vsel %vm94, %v46, 0
  %v306 = vsel %vm94, %v47, 0
  %v309 = vsel %vm94, %v48, 0
  %v312 = vsel %vm94, %v49, 0
  %v315 = vsel %vm94, %v50, 0
  %v318 = vsel %vm94, %v51, 0
  %v321 = vsel %vm94, %v52, 0
  %v324 = vsel %vm94, %v53, 0
  %v327 = vsel %vm94, %v54, 0
  %v330 = vsel %vm94, %v55, 0
  %v333 = vsel %vm167, %v59, 0
  %335 = vmatpush.msra.mxu0 0.0
  %336 = vmatpush.msra.mxu0 0.0
  %337 = vmatpush.msra.mxu0 0.0
  %338 = vmatpush.msra.mxu0 0.0
  %339 = vmatpush.msra.mxu0 0.0
  %340 = vmatpush.msra.mxu0 0.0
  %341 = vmatpush.msra.mxu0 0.0
  %342 = vmatpush.msra.mxu0 0.0
  %343 = vmatpush.msra.mxu0 0.0
  %344 = vmatpush.msra.mxu0 0.0
  %345 = vmatpush.msra.mxu0 0.0
  %346 = vmatpush.msra.mxu0 0.0
  %347 = vmatpush.msra.mxu0 %v333
  %348 = vmatpush.msra.mxu0 %v58
  %349 = vmatpush.msra.mxu0 %v57
  %350 = vmatpush.msra.mxu0 %v56
  %351 = vmatmul.f32.gmra.mxu0 %v261
  %v352 = vpop.f32.mrf.mxu0
  %v353 = vadd.f32 %v189, %v352
  %354 = vmatmul.f32.gmra.mxu0 %v264
  %v355 = vpop.f32.mrf.mxu0
  %v356 = vadd.f32 %v192, %v355
  %357 = vmatmul.f32.gmra.mxu0 %v267
  %v358 = vpop.f32.mrf.mxu0
  %v359 = vadd.f32 %v195, %v358
  %360 = vmatmul.f32.gmra.mxu0 %v270
  %v361 = vpop.f32.mrf.mxu0
  %v362 = vadd.f32 %v198, %v361
  %363 = vmatmul.f32.gmra.mxu0 %v273
  %v364 = vpop.f32.mrf.mxu0
  %v365 = vadd.f32 %v201, %v364
  %366 = vmatmul.f32.gmra.mxu0 %v276
  %v367 = vpop.f32.mrf.mxu0
  %v368 = vadd.f32 %v204, %v367
  %369 = vmatmul.f32.gmra.mxu0 %v279
  %v370 = vpop.f32.mrf.mxu0
  %v371 = vadd.f32 %v207, %v370
  %372 = vmatmul.f32.gmra.mxu0 %v282
  %v373 = vpop.f32.mrf.mxu0
  %v374 = vadd.f32 %v210, %v373
  %375 = vmatmul.f32.gmra.mxu0 %v285
  %v376 = vpop.f32.mrf.mxu0
  %v377 = vadd.f32 %v213, %v376
  %378 = vmatmul.f32.gmra.mxu0 %v288
  %v379 = vpop.f32.mrf.mxu0
  %v380 = vadd.f32 %v216, %v379
  %381 = vmatmul.f32.gmra.mxu0 %v291
  %v382 = vpop.f32.mrf.mxu0
  %v383 = vadd.f32 %v219, %v382
  %384 = vmatmul.f32.gmra.mxu0 %v294
  %v385 = vpop.f32.mrf.mxu0
  %v386 = vadd.f32 %v222, %v385
  %387 = vmatmul.f32.gmra.mxu0 %v297
  %v388 = vpop.f32.mrf.mxu0
  %v389 = vadd.f32 %v225, %v388
  %390 = vmatmul.f32.gmra.mxu0 %v300
  %v391 = vpop.f32.mrf.mxu0
  %v392 = vadd.f32 %v228, %v391
  %393 = vmatmul.f32.gmra.mxu0 %v303
  %v394 = vpop.f32.mrf.mxu0
  %v395 = vadd.f32 %v231, %v394
  %396 = vmatmul.f32.gmra.mxu0 %v306
  %v397 = vpop.f32.mrf.mxu0
  %v398 = vadd.f32 %v234, %v397
  %399 = vmatmul.f32.gmra.mxu0 %v309
  %v400 = vpop.f32.mrf.mxu0
  %v401 = vadd.f32 %v237, %v400
  %402 = vmatmul.f32.gmra.mxu0 %v312
  %v403 = vpop.f32.mrf.mxu0
  %v404 = vadd.f32 %v240, %v403
  %405 = vmatmul.f32.gmra.mxu0 %v315
  %v406 = vpop.f32.mrf.mxu0
  %v407 = vadd.f32 %v243, %v406
  %408 = vmatmul.f32.gmra.mxu0 %v318
  %v409 = vpop.f32.mrf.mxu0
  %v410 = vadd.f32 %v246, %v409
  %411 = vmatmul.f32.gmra.mxu0 %v321
  %v412 = vpop.f32.mrf.mxu0
  %v413 = vadd.f32 %v249, %v412
  %414 = vmatmul.f32.gmra.mxu0 %v324
  %v415 = vpop.f32.mrf.mxu0
  %v416 = vadd.f32 %v252, %v415
  %417 = vmatmul.f32.gmra.mxu0 %v327
  %v418 = vpop.f32.mrf.mxu0
  %v419 = vadd.f32 %v255, %v418
  %420 = vmatmul.f32.gmra.mxu0 %v330
  %v421 = vpop.f32.mrf.mxu0
  %v422 = vadd.f32 %v258, %v421
  %423 = vdwg.mxu0
  %s424 = scalar_lea.vmem %s2, 32
  %v425 = vld [vmem:[%s424] sm:$0xff]
  %v426 = vld [vmem:[%s424 + $0x8] sm:$0xff]
  %v427 = vld [vmem:[%s424 + $0x10] sm:$0xff]
  %v428 = vld [vmem:[%s424 + $0x18] sm:$0xf]
  %v430 = vsel %vm167, %v428, 0
  %432 = vmatpush.msra.mxu0 0.0
  %433 = vmatpush.msra.mxu0 0.0
  %434 = vmatpush.msra.mxu0 0.0
  %435 = vmatpush.msra.mxu0 0.0
  %436 = vmatpush.msra.mxu0 0.0
  %437 = vmatpush.msra.mxu0 0.0
  %438 = vmatpush.msra.mxu0 0.0
  %439 = vmatpush.msra.mxu0 0.0
  %440 = vmatpush.msra.mxu0 0.0
  %441 = vmatpush.msra.mxu0 0.0
  %442 = vmatpush.msra.mxu0 0.0
  %443 = vmatpush.msra.mxu0 0.0
  %444 = vmatpush.msra.mxu0 %v430
  %445 = vmatpush.msra.mxu0 %v427
  %446 = vmatpush.msra.mxu0 %v426
  %447 = vmatpush.msra.mxu0 %v425
  %448 = vmatmul.f32.gmra.mxu0 %v96
  %v449 = vpop.f32.mrf.mxu0
  %v450 = vadd.f32 0.0, %v449
  %451 = vmatmul.f32.gmra.mxu0 %v99
  %v452 = vpop.f32.mrf.mxu0
  %v453 = vadd.f32 0.0, %v452
  %454 = vmatmul.f32.gmra.mxu0 %v102
  %v455 = vpop.f32.mrf.mxu0
  %v456 = vadd.f32 0.0, %v455
  %457 = vmatmul.f32.gmra.mxu0 %v105
  %v458 = vpop.f32.mrf.mxu0
  %v459 = vadd.f32 0.0, %v458
  %460 = vmatmul.f32.gmra.mxu0 %v108
  %v461 = vpop.f32.mrf.mxu0
  %v462 = vadd.f32 0.0, %v461
  %463 = vmatmul.f32.gmra.mxu0 %v111
  %v464 = vpop.f32.mrf.mxu0
  %v465 = vadd.f32 0.0, %v464
  %466 = vmatmul.f32.gmra.mxu0 %v114
  %v467 = vpop.f32.mrf.mxu0
  %v468 = vadd.f32 0.0, %v467
  %469 = vmatmul.f32.gmra.mxu0 %v117
  %v470 = vpop.f32.mrf.mxu0
  %v471 = vadd.f32 0.0, %v470
  %472 = vmatmul.f32.gmra.mxu0 %v120
  %v473 = vpop.f32.mrf.mxu0
  %v474 = vadd.f32 0.0, %v473
  %475 = vmatmul.f32.gmra.mxu0 %v123
  %v476 = vpop.f32.mrf.mxu0
  %v477 = vadd.f32 0.0, %v476
  %478 = vmatmul.f32.gmra.mxu0 %v126
  %v479 = vpop.f32.mrf.mxu0
  %v480 = vadd.f32 0.0, %v479
  %481 = vmatmul.f32.gmra.mxu0 %v129
  %v482 = vpop.f32.mrf.mxu0
  %v483 = vadd.f32 0.0, %v482
  %484 = vmatmul.f32.gmra.mxu0 %v132
  %v485 = vpop.f32.mrf.mxu0
  %v486 = vadd.f32 0.0, %v485
  %487 = vmatmul.f32.gmra.mxu0 %v135
  %v488 = vpop.f32.mrf.mxu0
  %v489 = vadd.f32 0.0, %v488
  %490 = vmatmul.f32.gmra.mxu0 %v138
  %v491 = vpop.f32.mrf.mxu0
  %v492 = vadd.f32 0.0, %v491
  %493 = vmatmul.f32.gmra.mxu0 %v141
  %v494 = vpop.f32.mrf.mxu0
  %v495 = vadd.f32 0.0, %v494
  %496 = vmatmul.f32.gmra.mxu0 %v144
  %v497 = vpop.f32.mrf.mxu0
  %v498 = vadd.f32 0.0, %v497
  %499 = vmatmul.f32.gmra.mxu0 %v147
  %v500 = vpop.f32.mrf.mxu0
  %v501 = vadd.f32 0.0, %v500
  %502 = vmatmul.f32.gmra.mxu0 %v150
  %v503 = vpop.f32.mrf.mxu0
  %v504 = vadd.f32 0.0, %v503
  %505 = vmatmul.f32.gmra.mxu0 %v153
  %v506 = vpop.f32.mrf.mxu0
  %v507 = vadd.f32 0.0, %v506
  %508 = vmatmul.f32.gmra.mxu0 %v156
  %v509 = vpop.f32.mrf.mxu0
  %v510 = vadd.f32 0.0, %v509
  %511 = vmatmul.f32.gmra.mxu0 %v159
  %v512 = vpop.f32.mrf.mxu0
  %v513 = vadd.f32 0.0, %v512
  %514 = vmatmul.f32.gmra.mxu0 %v162
  %v515 = vpop.f32.mrf.mxu0
  %v516 = vadd.f32 0.0, %v515
  %517 = vmatmul.f32.gmra.mxu0 %v165
  %v518 = vpop.f32.mrf.mxu0
  %v519 = vadd.f32 0.0, %v518
  %520 = vdwg.mxu0
  %v522 = vsel %vm167, %v63, 0
  %524 = vmatpush.msra.mxu0 0.0
  %525 = vmatpush.msra.mxu0 0.0
  %526 = vmatpush.msra.mxu0 0.0
  %527 = vmatpush.msra.mxu0 0.0
  %528 = vmatpush.msra.mxu0 0.0
  %529 = vmatpush.msra.mxu0 0.0
  %530 = vmatpush.msra.mxu0 0.0
  %531 = vmatpush.msra.mxu0 0.0
  %532 = vmatpush.msra.mxu0 0.0
  %533 = vmatpush.msra.mxu0 0.0
  %534 = vmatpush.msra.mxu0 0.0
  %535 = vmatpush.msra.mxu0 0.0
  %536 = vmatpush.msra.mxu0 %v522
  %537 = vmatpush.msra.mxu0 %v62
  %538 = vmatpush.msra.mxu0 %v61
  %539 = vmatpush.msra.mxu0 %v60
  %540 = vmatmul.f32.gmra.mxu0 %v261
  %v541 = vpop.f32.mrf.mxu0
  %v542 = vadd.f32 %v450, %v541
  %543 = vmatmul.f32.gmra.mxu0 %v264
  %v544 = vpop.f32.mrf.mxu0
  %v545 = vadd.f32 %v453, %v544
  %546 = vmatmul.f32.gmra.mxu0 %v267
  %v547 = vpop.f32.mrf.mxu0
  %v548 = vadd.f32 %v456, %v547
  %549 = vmatmul.f32.gmra.mxu0 %v270
  %v550 = vpop.f32.mrf.mxu0
  %v551 = vadd.f32 %v459, %v550
  %552 = vmatmul.f32.gmra.mxu0 %v273
  %v553 = vpop.f32.mrf.mxu0
  %v554 = vadd.f32 %v462, %v553
  %555 = vmatmul.f32.gmra.mxu0 %v276
  %v556 = vpop.f32.mrf.mxu0
  %v557 = vadd.f32 %v465, %v556
  %558 = vmatmul.f32.gmra.mxu0 %v279
  %v559 = vpop.f32.mrf.mxu0
  %v560 = vadd.f32 %v468, %v559
  %561 = vmatmul.f32.gmra.mxu0 %v282
  %v562 = vpop.f32.mrf.mxu0
  %v563 = vadd.f32 %v471, %v562
  %564 = vmatmul.f32.gmra.mxu0 %v285
  %v565 = vpop.f32.mrf.mxu0
  %v566 = vadd.f32 %v474, %v565
  %567 = vmatmul.f32.gmra.mxu0 %v288
  %v568 = vpop.f32.mrf.mxu0
  %v569 = vadd.f32 %v477, %v568
  %570 = vmatmul.f32.gmra.mxu0 %v291
  %v571 = vpop.f32.mrf.mxu0
  %v572 = vadd.f32 %v480, %v571
  %573 = vmatmul.f32.gmra.mxu0 %v294
  %v574 = vpop.f32.mrf.mxu0
  %v575 = vadd.f32 %v483, %v574
  %576 = vmatmul.f32.gmra.mxu0 %v297
  %v577 = vpop.f32.mrf.mxu0
  %v578 = vadd.f32 %v486, %v577
  %579 = vmatmul.f32.gmra.mxu0 %v300
  %v580 = vpop.f32.mrf.mxu0
  %v581 = vadd.f32 %v489, %v580
  %582 = vmatmul.f32.gmra.mxu0 %v303
  %v583 = vpop.f32.mrf.mxu0
  %v584 = vadd.f32 %v492, %v583
  %585 = vmatmul.f32.gmra.mxu0 %v306
  %v586 = vpop.f32.mrf.mxu0
  %v587 = vadd.f32 %v495, %v586
  %588 = vmatmul.f32.gmra.mxu0 %v309
  %v589 = vpop.f32.mrf.mxu0
  %v590 = vadd.f32 %v498, %v589
  %591 = vmatmul.f32.gmra.mxu0 %v312
  %v592 = vpop.f32.mrf.mxu0
  %v593 = vadd.f32 %v501, %v592
  %594 = vmatmul.f32.gmra.mxu0 %v315
  %v595 = vpop.f32.mrf.mxu0
  %v596 = vadd.f32 %v504, %v595
  %597 = vmatmul.f32.gmra.mxu0 %v318
  %v598 = vpop.f32.mrf.mxu0
  %v599 = vadd.f32 %v507, %v598
  %600 = vmatmul.f32.gmra.mxu0 %v321
  %v601 = vpop.f32.mrf.mxu0
  %v602 = vadd.f32 %v510, %v601
  %603 = vmatmul.f32.gmra.mxu0 %v324
  %v604 = vpop.f32.mrf.mxu0
  %v605 = vadd.f32 %v513, %v604
  %606 = vmatmul.f32.gmra.mxu0 %v327
  %v607 = vpop.f32.mrf.mxu0
  %v608 = vadd.f32 %v516, %v607
  %609 = vmatmul.f32.gmra.mxu0 %v330
  %v610 = vpop.f32.mrf.mxu0
  %v611 = vadd.f32 %v519, %v610
  %612 = vdwg.mxu0
  %s613 = scalar_lea.vmem %s0, 16
  %v614 = vld [vmem:[%s613] sm:$0xff]
  %v615 = vld [vmem:[%s613 + $0x8] sm:$0xff]
  %v616 = vld [vmem:[%s613 + $0x10] sm:$0xff]
  %v617 = vld [vmem:[%s613 + $0x18] sm:$0xff]
  %v618 = vld [vmem:[%s613 + $0x20] sm:$0xff]
  %v619 = vld [vmem:[%s613 + $0x28] sm:$0xff]
  %v620 = vld [vmem:[%s613 + $0x30] sm:$0xff]
  %v621 = vld [vmem:[%s613 + $0x38] sm:$0xff]
  %v622 = vld [vmem:[%s613 + $0x40] sm:$0xff]
  %v623 = vld [vmem:[%s613 + $0x48] sm:$0xff]
  %v624 = vld [vmem:[%s613 + $0x50] sm:$0xff]
  %v625 = vld [vmem:[%s613 + $0x58] sm:$0xff]
  %v626 = vld [vmem:[%s613 + $0x60] sm:$0xff]
  %v627 = vld [vmem:[%s613 + $0x68] sm:$0xff]
  %v628 = vld [vmem:[%s613 + $0x70] sm:$0xff]
  %v629 = vld [vmem:[%s613 + $0x78] sm:$0xff]
  %v630 = vld [vmem:[%s613 + $0x80] sm:$0xff]
  %v631 = vld [vmem:[%s613 + $0x88] sm:$0xff]
  %v632 = vld [vmem:[%s613 + $0x90] sm:$0xff]
  %v633 = vld [vmem:[%s613 + $0x98] sm:$0xff]
  %v634 = vld [vmem:[%s613 + $0xa0] sm:$0xff]
  %v635 = vld [vmem:[%s613 + $0xa8] sm:$0xff]
  %v636 = vld [vmem:[%s613 + $0xb0] sm:$0xff]
  %v637 = vld [vmem:[%s613 + $0xb8] sm:$0xff]
  %s638 = scalar_lea.vmem %s1, 64
  %v639 = vld [vmem:[%s638] sm:$0xff]
  %v640 = vld [vmem:[%s638 + $0x8] sm:$0xff]
  %v641 = vld [vmem:[%s638 + $0x10] sm:$0xff]
  %v642 = vld [vmem:[%s638 + $0x18] sm:$0xf]
  %v644 = vsel %vm94, %v614, 0
  %v647 = vsel %vm94, %v615, 0
  %v650 = vsel %vm94, %v616, 0
  %v653 = vsel %vm94, %v617, 0
  %v656 = vsel %vm94, %v618, 0
  %v659 = vsel %vm94, %v619, 0
  %v662 = vsel %vm94, %v620, 0
  %v665 = vsel %vm94, %v621, 0
  %v668 = vsel %vm94, %v622, 0
  %v671 = vsel %vm94, %v623, 0
  %v674 = vsel %vm94, %v624, 0
  %v677 = vsel %vm94, %v625, 0
  %v680 = vsel %vm94, %v626, 0
  %v683 = vsel %vm94, %v627, 0
  %v686 = vsel %vm94, %v628, 0
  %v689 = vsel %vm94, %v629, 0
  %v692 = vsel %vm94, %v630, 0
  %v695 = vsel %vm94, %v631, 0
  %v698 = vsel %vm94, %v632, 0
  %v701 = vsel %vm94, %v633, 0
  %v704 = vsel %vm94, %v634, 0
  %v707 = vsel %vm94, %v635, 0
  %v710 = vsel %vm94, %v636, 0
  %v713 = vsel %vm94, %v637, 0
  %v716 = vsel %vm167, %v642, 0
  %718 = vmatpush.msra.mxu0 0.0
  %719 = vmatpush.msra.mxu0 0.0
  %720 = vmatpush.msra.mxu0 0.0
  %721 = vmatpush.msra.mxu0 0.0
  %722 = vmatpush.msra.mxu0 0.0
  %723 = vmatpush.msra.mxu0 0.0
  %724 = vmatpush.msra.mxu0 0.0
  %725 = vmatpush.msra.mxu0 0.0
  %726 = vmatpush.msra.mxu0 0.0
  %727 = vmatpush.msra.mxu0 0.0
  %728 = vmatpush.msra.mxu0 0.0
  %729 = vmatpush.msra.mxu0 0.0
  %730 = vmatpush.msra.mxu0 %v716
  %731 = vmatpush.msra.mxu0 %v641
  %732 = vmatpush.msra.mxu0 %v640
  %733 = vmatpush.msra.mxu0 %v639
  %734 = vmatmul.f32.gmra.mxu0 %v644
  %v735 = vpop.f32.mrf.mxu0
  %v736 = vadd.f32 0.0, %v735
  %737 = vmatmul.f32.gmra.mxu0 %v647
  %v738 = vpop.f32.mrf.mxu0
  %v739 = vadd.f32 0.0, %v738
  %740 = vmatmul.f32.gmra.mxu0 %v650
  %v741 = vpop.f32.mrf.mxu0
  %v742 = vadd.f32 0.0, %v741
  %743 = vmatmul.f32.gmra.mxu0 %v653
  %v744 = vpop.f32.mrf.mxu0
  %v745 = vadd.f32 0.0, %v744
  %746 = vmatmul.f32.gmra.mxu0 %v656
  %v747 = vpop.f32.mrf.mxu0
  %v748 = vadd.f32 0.0, %v747
  %749 = vmatmul.f32.gmra.mxu0 %v659
  %v750 = vpop.f32.mrf.mxu0
  %v751 = vadd.f32 0.0, %v750
  %752 = vmatmul.f32.gmra.mxu0 %v662
  %v753 = vpop.f32.mrf.mxu0
  %v754 = vadd.f32 0.0, %v753
  %755 = vmatmul.f32.gmra.mxu0 %v665
  %v756 = vpop.f32.mrf.mxu0
  %v757 = vadd.f32 0.0, %v756
  %758 = vmatmul.f32.gmra.mxu0 %v668
  %v759 = vpop.f32.mrf.mxu0
  %v760 = vadd.f32 0.0, %v759
  %761 = vmatmul.f32.gmra.mxu0 %v671
  %v762 = vpop.f32.mrf.mxu0
  %v763 = vadd.f32 0.0, %v762
  %764 = vmatmul.f32.gmra.mxu0 %v674
  %v765 = vpop.f32.mrf.mxu0
  %v766 = vadd.f32 0.0, %v765
  %767 = vmatmul.f32.gmra.mxu0 %v677
  %v768 = vpop.f32.mrf.mxu0
  %v769 = vadd.f32 0.0, %v768
  %770 = vmatmul.f32.gmra.mxu0 %v680
  %v771 = vpop.f32.mrf.mxu0
  %v772 = vadd.f32 0.0, %v771
  %773 = vmatmul.f32.gmra.mxu0 %v683
  %v774 = vpop.f32.mrf.mxu0
  %v775 = vadd.f32 0.0, %v774
  %776 = vmatmul.f32.gmra.mxu0 %v686
  %v777 = vpop.f32.mrf.mxu0
  %v778 = vadd.f32 0.0, %v777
  %779 = vmatmul.f32.gmra.mxu0 %v689
  %v780 = vpop.f32.mrf.mxu0
  %v781 = vadd.f32 0.0, %v780
  %782 = vmatmul.f32.gmra.mxu0 %v692
  %v783 = vpop.f32.mrf.mxu0
  %v784 = vadd.f32 0.0, %v783
  %785 = vmatmul.f32.gmra.mxu0 %v695
  %v786 = vpop.f32.mrf.mxu0
  %v787 = vadd.f32 0.0, %v786
  %788 = vmatmul.f32.gmra.mxu0 %v698
  %v789 = vpop.f32.mrf.mxu0
  %v790 = vadd.f32 0.0, %v789
  %791 = vmatmul.f32.gmra.mxu0 %v701
  %v792 = vpop.f32.mrf.mxu0
  %v793 = vadd.f32 0.0, %v792
  %794 = vmatmul.f32.gmra.mxu0 %v704
  %v795 = vpop.f32.mrf.mxu0
  %v796 = vadd.f32 0.0, %v795
  %797 = vmatmul.f32.gmra.mxu0 %v707
  %v798 = vpop.f32.mrf.mxu0
  %v799 = vadd.f32 0.0, %v798
  %800 = vmatmul.f32.gmra.mxu0 %v710
  %v801 = vpop.f32.mrf.mxu0
  %v802 = vadd.f32 0.0, %v801
  %803 = vmatmul.f32.gmra.mxu0 %v713
  %v804 = vpop.f32.mrf.mxu0
  %v805 = vadd.f32 0.0, %v804
  %806 = vdwg.mxu0
  %v807 = vadd.f32 %v353, %v736
  %v808 = vadd.f32 %v356, %v739
  %v809 = vadd.f32 %v359, %v742
  %v810 = vadd.f32 %v362, %v745
  %v811 = vadd.f32 %v365, %v748
  %v812 = vadd.f32 %v368, %v751
  %v813 = vadd.f32 %v371, %v754
  %v814 = vadd.f32 %v374, %v757
  %v815 = vadd.f32 %v377, %v760
  %v816 = vadd.f32 %v380, %v763
  %v817 = vadd.f32 %v383, %v766
  %v818 = vadd.f32 %v386, %v769
  %v819 = vadd.f32 %v389, %v772
  %v820 = vadd.f32 %v392, %v775
  %v821 = vadd.f32 %v395, %v778
  %v822 = vadd.f32 %v398, %v781
  %v823 = vadd.f32 %v401, %v784
  %v824 = vadd.f32 %v404, %v787
  %v825 = vadd.f32 %v407, %v790
  %v826 = vadd.f32 %v410, %v793
  %v827 = vadd.f32 %v413, %v796
  %v828 = vadd.f32 %v416, %v799
  %v829 = vadd.f32 %v419, %v802
  %v830 = vadd.f32 %v422, %v805
  %s831 = scalar_lea.vmem %s2, 64
  %v832 = vld [vmem:[%s831] sm:$0xff]
  %v833 = vld [vmem:[%s831 + $0x8] sm:$0xff]
  %v834 = vld [vmem:[%s831 + $0x10] sm:$0xff]
  %v835 = vld [vmem:[%s831 + $0x18] sm:$0xf]
  %v837 = vsel %vm167, %v835, 0
  %839 = vmatpush.msra.mxu0 0.0
  %840 = vmatpush.msra.mxu0 0.0
  %841 = vmatpush.msra.mxu0 0.0
  %842 = vmatpush.msra.mxu0 0.0
  %843 = vmatpush.msra.mxu0 0.0
  %844 = vmatpush.msra.mxu0 0.0
  %845 = vmatpush.msra.mxu0 0.0
  %846 = vmatpush.msra.mxu0 0.0
  %847 = vmatpush.msra.mxu0 0.0
  %848 = vmatpush.msra.mxu0 0.0
  %849 = vmatpush.msra.mxu0 0.0
  %850 = vmatpush.msra.mxu0 0.0
  %851 = vmatpush.msra.mxu0 %v837
  %852 = vmatpush.msra.mxu0 %v834
  %853 = vmatpush.msra.mxu0 %v833
  %854 = vmatpush.msra.mxu0 %v832
  %855 = vmatmul.f32.gmra.mxu0 %v644
  %v856 = vpop.f32.mrf.mxu0
  %v857 = vadd.f32 0.0, %v856
  %858 = vmatmul.f32.gmra.mxu0 %v647
  %v859 = vpop.f32.mrf.mxu0
  %v860 = vadd.f32 0.0, %v859
  %861 = vmatmul.f32.gmra.mxu0 %v650
  %v862 = vpop.f32.mrf.mxu0
  %v863 = vadd.f32 0.0, %v862
  %864 = vmatmul.f32.gmra.mxu0 %v653
  %v865 = vpop.f32.mrf.mxu0
  %v866 = vadd.f32 0.0, %v865
  %867 = vmatmul.f32.gmra.mxu0 %v656
  %v868 = vpop.f32.mrf.mxu0
  %v869 = vadd.f32 0.0, %v868
  %870 = vmatmul.f32.gmra.mxu0 %v659
  %v871 = vpop.f32.mrf.mxu0
  %v872 = vadd.f32 0.0, %v871
  %873 = vmatmul.f32.gmra.mxu0 %v662
  %v874 = vpop.f32.mrf.mxu0
  %v875 = vadd.f32 0.0, %v874
  %876 = vmatmul.f32.gmra.mxu0 %v665
  %v877 = vpop.f32.mrf.mxu0
  %v878 = vadd.f32 0.0, %v877
  %879 = vmatmul.f32.gmra.mxu0 %v668
  %v880 = vpop.f32.mrf.mxu0
  %v881 = vadd.f32 0.0, %v880
  %882 = vmatmul.f32.gmra.mxu0 %v671
  %v883 = vpop.f32.mrf.mxu0
  %v884 = vadd.f32 0.0, %v883
  %885 = vmatmul.f32.gmra.mxu0 %v674
  %v886 = vpop.f32.mrf.mxu0
  %v887 = vadd.f32 0.0, %v886
  %888 = vmatmul.f32.gmra.mxu0 %v677
  %v889 = vpop.f32.mrf.mxu0
  %v890 = vadd.f32 0.0, %v889
  %891 = vmatmul.f32.gmra.mxu0 %v680
  %v892 = vpop.f32.mrf.mxu0
  %v893 = vadd.f32 0.0, %v892
  %894 = vmatmul.f32.gmra.mxu0 %v683
  %v895 = vpop.f32.mrf.mxu0
  %v896 = vadd.f32 0.0, %v895
  %897 = vmatmul.f32.gmra.mxu0 %v686
  %v898 = vpop.f32.mrf.mxu0
  %v899 = vadd.f32 0.0, %v898
  %900 = vmatmul.f32.gmra.mxu0 %v689
  %v901 = vpop.f32.mrf.mxu0
  %v902 = vadd.f32 0.0, %v901
  %903 = vmatmul.f32.gmra.mxu0 %v692
  %v904 = vpop.f32.mrf.mxu0
  %v905 = vadd.f32 0.0, %v904
  %906 = vmatmul.f32.gmra.mxu0 %v695
  %v907 = vpop.f32.mrf.mxu0
  %v908 = vadd.f32 0.0, %v907
  %909 = vmatmul.f32.gmra.mxu0 %v698
  %v910 = vpop.f32.mrf.mxu0
  %v911 = vadd.f32 0.0, %v910
  %912 = vmatmul.f32.gmra.mxu0 %v701
  %v913 = vpop.f32.mrf.mxu0
  %v914 = vadd.f32 0.0, %v913
  %915 = vmatmul.f32.gmra.mxu0 %v704
  %v916 = vpop.f32.mrf.mxu0
  %v917 = vadd.f32 0.0, %v916
  %918 = vmatmul.f32.gmra.mxu0 %v707
  %v919 = vpop.f32.mrf.mxu0
  %v920 = vadd.f32 0.0, %v919
  %921 = vmatmul.f32.gmra.mxu0 %v710
  %v922 = vpop.f32.mrf.mxu0
  %v923 = vadd.f32 0.0, %v922
  %924 = vmatmul.f32.gmra.mxu0 %v713
  %v925 = vpop.f32.mrf.mxu0
  %v926 = vadd.f32 0.0, %v925
  %927 = vdwg.mxu0
  %v928 = vadd.f32 %v542, %v857
  %v929 = vadd.f32 %v545, %v860
  %v930 = vadd.f32 %v548, %v863
  %v931 = vadd.f32 %v551, %v866
  %v932 = vadd.f32 %v554, %v869
  %v933 = vadd.f32 %v557, %v872
  %v934 = vadd.f32 %v560, %v875
  %v935 = vadd.f32 %v563, %v878
  %v936 = vadd.f32 %v566, %v881
  %v937 = vadd.f32 %v569, %v884
  %v938 = vadd.f32 %v572, %v887
  %v939 = vadd.f32 %v575, %v890
  %v940 = vadd.f32 %v578, %v893
  %v941 = vadd.f32 %v581, %v896
  %v942 = vadd.f32 %v584, %v899
  %v943 = vadd.f32 %v587, %v902
  %v944 = vadd.f32 %v590, %v905
  %v945 = vadd.f32 %v593, %v908
  %v946 = vadd.f32 %v596, %v911
  %v947 = vadd.f32 %v599, %v914
  %v948 = vadd.f32 %v602, %v917
  %v949 = vadd.f32 %v605, %v920
  %v950 = vadd.f32 %v608, %v923
  %v951 = vadd.f32 %v611, %v926
  %s952 = scalar_lea.vmem %s0, 24
  %v953 = vld [vmem:[%s952] sm:$0xff]
  %v954 = vld [vmem:[%s952 + $0x8] sm:$0xff]
  %v955 = vld [vmem:[%s952 + $0x10] sm:$0xff]
  %v956 = vld [vmem:[%s952 + $0x18] sm:$0xff]
  %v957 = vld [vmem:[%s952 + $0x20] sm:$0xff]
  %v958 = vld [vmem:[%s952 + $0x28] sm:$0xff]
  %v959 = vld [vmem:[%s952 + $0x30] sm:$0xff]
  %v960 = vld [vmem:[%s952 + $0x38] sm:$0xff]
  %v961 = vld [vmem:[%s952 + $0x40] sm:$0xff]
  %v962 = vld [vmem:[%s952 + $0x48] sm:$0xff]
  %v963 = vld [vmem:[%s952 + $0x50] sm:$0xff]
  %v964 = vld [vmem:[%s952 + $0x58] sm:$0xff]
  %v965 = vld [vmem:[%s952 + $0x60] sm:$0xff]
  %v966 = vld [vmem:[%s952 + $0x68] sm:$0xff]
  %v967 = vld [vmem:[%s952 + $0x70] sm:$0xff]
  %v968 = vld [vmem:[%s952 + $0x78] sm:$0xff]
  %v969 = vld [vmem:[%s952 + $0x80] sm:$0xff]
  %v970 = vld [vmem:[%s952 + $0x88] sm:$0xff]
  %v971 = vld [vmem:[%s952 + $0x90] sm:$0xff]
  %v972 = vld [vmem:[%s952 + $0x98] sm:$0xff]
  %v973 = vld [vmem:[%s952 + $0xa0] sm:$0xff]
  %v974 = vld [vmem:[%s952 + $0xa8] sm:$0xff]
  %v975 = vld [vmem:[%s952 + $0xb0] sm:$0xff]
  %v976 = vld [vmem:[%s952 + $0xb8] sm:$0xff]
  %s977 = scalar_lea.vmem %s1, 96
  %v978 = vld [vmem:[%s977] sm:$0xff]
  %v979 = vld [vmem:[%s977 + $0x8] sm:$0xff]
  %v980 = vld [vmem:[%s977 + $0x10] sm:$0xff]
  %v981 = vld [vmem:[%s977 + $0x18] sm:$0xf]
  %v983 = vsel %vm94, %v953, 0
  %v986 = vsel %vm94, %v954, 0
  %v989 = vsel %vm94, %v955, 0
  %v992 = vsel %vm94, %v956, 0
  %v995 = vsel %vm94, %v957, 0
  %v998 = vsel %vm94, %v958, 0
  %v1001 = vsel %vm94, %v959, 0
  %v1004 = vsel %vm94, %v960, 0
  %v1007 = vsel %vm94, %v961, 0
  %v1010 = vsel %vm94, %v962, 0
  %v1013 = vsel %vm94, %v963, 0
  %v1016 = vsel %vm94, %v964, 0
  %v1019 = vsel %vm94, %v965, 0
  %v1022 = vsel %vm94, %v966, 0
  %v1025 = vsel %vm94, %v967, 0
  %v1028 = vsel %vm94, %v968, 0
  %v1031 = vsel %vm94, %v969, 0
  %v1034 = vsel %vm94, %v970, 0
  %v1037 = vsel %vm94, %v971, 0
  %v1040 = vsel %vm94, %v972, 0
  %v1043 = vsel %vm94, %v973, 0
  %v1046 = vsel %vm94, %v974, 0
  %v1049 = vsel %vm94, %v975, 0
  %v1052 = vsel %vm94, %v976, 0
  %v1055 = vsel %vm167, %v981, 0
  %1057 = vmatpush.msra.mxu0 0.0
  %1058 = vmatpush.msra.mxu0 0.0
  %1059 = vmatpush.msra.mxu0 0.0
  %1060 = vmatpush.msra.mxu0 0.0
  %1061 = vmatpush.msra.mxu0 0.0
  %1062 = vmatpush.msra.mxu0 0.0
  %1063 = vmatpush.msra.mxu0 0.0
  %1064 = vmatpush.msra.mxu0 0.0
  %1065 = vmatpush.msra.mxu0 0.0
  %1066 = vmatpush.msra.mxu0 0.0
  %1067 = vmatpush.msra.mxu0 0.0
  %1068 = vmatpush.msra.mxu0 0.0
  %1069 = vmatpush.msra.mxu0 %v1055
  %1070 = vmatpush.msra.mxu0 %v980
  %1071 = vmatpush.msra.mxu0 %v979
  %1072 = vmatpush.msra.mxu0 %v978
  %1073 = vmatmul.f32.gmra.mxu0 %v983
  %v1074 = vpop.f32.mrf.mxu0
  %v1075 = vadd.f32 0.0, %v1074
  %1076 = vmatmul.f32.gmra.mxu0 %v986
  %v1077 = vpop.f32.mrf.mxu0
  %v1078 = vadd.f32 0.0, %v1077
  %1079 = vmatmul.f32.gmra.mxu0 %v989
  %v1080 = vpop.f32.mrf.mxu0
  %v1081 = vadd.f32 0.0, %v1080
  %1082 = vmatmul.f32.gmra.mxu0 %v992
  %v1083 = vpop.f32.mrf.mxu0
  %v1084 = vadd.f32 0.0, %v1083
  %1085 = vmatmul.f32.gmra.mxu0 %v995
  %v1086 = vpop.f32.mrf.mxu0
  %v1087 = vadd.f32 0.0, %v1086
  %1088 = vmatmul.f32.gmra.mxu0 %v998
  %v1089 = vpop.f32.mrf.mxu0
  %v1090 = vadd.f32 0.0, %v1089
  %1091 = vmatmul.f32.gmra.mxu0 %v1001
  %v1092 = vpop.f32.mrf.mxu0
  %v1093 = vadd.f32 0.0, %v1092
  %1094 = vmatmul.f32.gmra.mxu0 %v1004
  %v1095 = vpop.f32.mrf.mxu0
  %v1096 = vadd.f32 0.0, %v1095
  %1097 = vmatmul.f32.gmra.mxu0 %v1007
  %v1098 = vpop.f32.mrf.mxu0
  %v1099 = vadd.f32 0.0, %v1098
  %1100 = vmatmul.f32.gmra.mxu0 %v1010
  %v1101 = vpop.f32.mrf.mxu0
  %v1102 = vadd.f32 0.0, %v1101
  %1103 = vmatmul.f32.gmra.mxu0 %v1013
  %v1104 = vpop.f32.mrf.mxu0
  %v1105 = vadd.f32 0.0, %v1104
  %1106 = vmatmul.f32.gmra.mxu0 %v1016
  %v1107 = vpop.f32.mrf.mxu0
  %v1108 = vadd.f32 0.0, %v1107
  %1109 = vmatmul.f32.gmra.mxu0 %v1019
  %v1110 = vpop.f32.mrf.mxu0
  %v1111 = vadd.f32 0.0, %v1110
  %1112 = vmatmul.f32.gmra.mxu0 %v1022
  %v1113 = vpop.f32.mrf.mxu0
  %v1114 = vadd.f32 0.0, %v1113
  %1115 = vmatmul.f32.gmra.mxu0 %v1025
  %v1116 = vpop.f32.mrf.mxu0
  %v1117 = vadd.f32 0.0, %v1116
  %1118 = vmatmul.f32.gmra.mxu0 %v1028
  %v1119 = vpop.f32.mrf.mxu0
  %v1120 = vadd.f32 0.0, %v1119
  %1121 = vmatmul.f32.gmra.mxu0 %v1031
  %v1122 = vpop.f32.mrf.mxu0
  %v1123 = vadd.f32 0.0, %v1122
  %1124 = vmatmul.f32.gmra.mxu0 %v1034
  %v1125 = vpop.f32.mrf.mxu0
  %v1126 = vadd.f32 0.0, %v1125
  %1127 = vmatmul.f32.gmra.mxu0 %v1037
  %v1128 = vpop.f32.mrf.mxu0
  %v1129 = vadd.f32 0.0, %v1128
  %1130 = vmatmul.f32.gmra.mxu0 %v1040
  %v1131 = vpop.f32.mrf.mxu0
  %v1132 = vadd.f32 0.0, %v1131
  %1133 = vmatmul.f32.gmra.mxu0 %v1043
  %v1134 = vpop.f32.mrf.mxu0
  %v1135 = vadd.f32 0.0, %v1134
  %1136 = vmatmul.f32.gmra.mxu0 %v1046
  %v1137 = vpop.f32.mrf.mxu0
  %v1138 = vadd.f32 0.0, %v1137
  %1139 = vmatmul.f32.gmra.mxu0 %v1049
  %v1140 = vpop.f32.mrf.mxu0
  %v1141 = vadd.f32 0.0, %v1140
  %1142 = vmatmul.f32.gmra.mxu0 %v1052
  %v1143 = vpop.f32.mrf.mxu0
  %v1144 = vadd.f32 0.0, %v1143
  %1145 = vdwg.mxu0
  %v1146 = vadd.f32 %v807, %v1075
  %v1147 = vadd.f32 %v808, %v1078
  %v1148 = vadd.f32 %v809, %v1081
  %v1149 = vadd.f32 %v810, %v1084
  %v1150 = vadd.f32 %v811, %v1087
  %v1151 = vadd.f32 %v812, %v1090
  %v1152 = vadd.f32 %v813, %v1093
  %v1153 = vadd.f32 %v814, %v1096
  %v1154 = vadd.f32 %v815, %v1099
  %v1155 = vadd.f32 %v816, %v1102
  %v1156 = vadd.f32 %v817, %v1105
  %v1157 = vadd.f32 %v818, %v1108
  %v1158 = vadd.f32 %v819, %v1111
  %v1159 = vadd.f32 %v820, %v1114
  %v1160 = vadd.f32 %v821, %v1117
  %v1161 = vadd.f32 %v822, %v1120
  %v1162 = vadd.f32 %v823, %v1123
  %v1163 = vadd.f32 %v824, %v1126
  %v1164 = vadd.f32 %v825, %v1129
  %v1165 = vadd.f32 %v826, %v1132
  %v1166 = vadd.f32 %v827, %v1135
  %v1167 = vadd.f32 %v828, %v1138
  %v1168 = vadd.f32 %v829, %v1141
  %v1169 = vadd.f32 %v830, %v1144
  %s1170 = scalar_lea.vmem %s2, 96
  %v1171 = vld [vmem:[%s1170] sm:$0xff]
  %v1172 = vld [vmem:[%s1170 + $0x8] sm:$0xff]
  %v1173 = vld [vmem:[%s1170 + $0x10] sm:$0xff]
  %v1174 = vld [vmem:[%s1170 + $0x18] sm:$0xf]
  %v1176 = vsel %vm167, %v1174, 0
  %1178 = vmatpush.msra.mxu0 0.0
  %1179 = vmatpush.msra.mxu0 0.0
  %1180 = vmatpush.msra.mxu0 0.0
  %1181 = vmatpush.msra.mxu0 0.0
  %1182 = vmatpush.msra.mxu0 0.0
  %1183 = vmatpush.msra.mxu0 0.0
  %1184 = vmatpush.msra.mxu0 0.0
  %1185 = vmatpush.msra.mxu0 0.0
  %1186 = vmatpush.msra.mxu0 0.0
  %1187 = vmatpush.msra.mxu0 0.0
  %1188 = vmatpush.msra.mxu0 0.0
  %1189 = vmatpush.msra.mxu0 0.0
  %1190 = vmatpush.msra.mxu0 %v1176
  %1191 = vmatpush.msra.mxu0 %v1173
  %1192 = vmatpush.msra.mxu0 %v1172
  %1193 = vmatpush.msra.mxu0 %v1171
  %1194 = vmatmul.f32.gmra.mxu0 %v983
  %v1195 = vpop.f32.mrf.mxu0
  %v1196 = vadd.f32 0.0, %v1195
  %1197 = vmatmul.f32.gmra.mxu0 %v986
  %v1198 = vpop.f32.mrf.mxu0
  %v1199 = vadd.f32 0.0, %v1198
  %1200 = vmatmul.f32.gmra.mxu0 %v989
  %v1201 = vpop.f32.mrf.mxu0
  %v1202 = vadd.f32 0.0, %v1201
  %1203 = vmatmul.f32.gmra.mxu0 %v992
  %v1204 = vpop.f32.mrf.mxu0
  %v1205 = vadd.f32 0.0, %v1204
  %1206 = vmatmul.f32.gmra.mxu0 %v995
  %v1207 = vpop.f32.mrf.mxu0
  %v1208 = vadd.f32 0.0, %v1207
  %1209 = vmatmul.f32.gmra.mxu0 %v998
  %v1210 = vpop.f32.mrf.mxu0
  %v1211 = vadd.f32 0.0, %v1210
  %1212 = vmatmul.f32.gmra.mxu0 %v1001
  %v1213 = vpop.f32.mrf.mxu0
  %v1214 = vadd.f32 0.0, %v1213
  %1215 = vmatmul.f32.gmra.mxu0 %v1004
  %v1216 = vpop.f32.mrf.mxu0
  %v1217 = vadd.f32 0.0, %v1216
  %1218 = vmatmul.f32.gmra.mxu0 %v1007
  %v1219 = vpop.f32.mrf.mxu0
  %v1220 = vadd.f32 0.0, %v1219
  %1221 = vmatmul.f32.gmra.mxu0 %v1010
  %v1222 = vpop.f32.mrf.mxu0
  %v1223 = vadd.f32 0.0, %v1222
  %1224 = vmatmul.f32.gmra.mxu0 %v1013
  %v1225 = vpop.f32.mrf.mxu0
  %v1226 = vadd.f32 0.0, %v1225
  %1227 = vmatmul.f32.gmra.mxu0 %v1016
  %v1228 = vpop.f32.mrf.mxu0
  %v1229 = vadd.f32 0.0, %v1228
  %1230 = vmatmul.f32.gmra.mxu0 %v1019
  %v1231 = vpop.f32.mrf.mxu0
  %v1232 = vadd.f32 0.0, %v1231
  %1233 = vmatmul.f32.gmra.mxu0 %v1022
  %v1234 = vpop.f32.mrf.mxu0
  %v1235 = vadd.f32 0.0, %v1234
  %1236 = vmatmul.f32.gmra.mxu0 %v1025
  %v1237 = vpop.f32.mrf.mxu0
  %v1238 = vadd.f32 0.0, %v1237
  %1239 = vmatmul.f32.gmra.mxu0 %v1028
  %v1240 = vpop.f32.mrf.mxu0
  %v1241 = vadd.f32 0.0, %v1240
  %1242 = vmatmul.f32.gmra.mxu0 %v1031
  %v1243 = vpop.f32.mrf.mxu0
  %v1244 = vadd.f32 0.0, %v1243
  %1245 = vmatmul.f32.gmra.mxu0 %v1034
  %v1246 = vpop.f32.mrf.mxu0
  %v1247 = vadd.f32 0.0, %v1246
  %1248 = vmatmul.f32.gmra.mxu0 %v1037
  %v1249 = vpop.f32.mrf.mxu0
  %v1250 = vadd.f32 0.0, %v1249
  %1251 = vmatmul.f32.gmra.mxu0 %v1040
  %v1252 = vpop.f32.mrf.mxu0
  %v1253 = vadd.f32 0.0, %v1252
  %1254 = vmatmul.f32.gmra.mxu0 %v1043
  %v1255 = vpop.f32.mrf.mxu0
  %v1256 = vadd.f32 0.0, %v1255
  %1257 = vmatmul.f32.gmra.mxu0 %v1046
  %v1258 = vpop.f32.mrf.mxu0
  %v1259 = vadd.f32 0.0, %v1258
  %1260 = vmatmul.f32.gmra.mxu0 %v1049
  %v1261 = vpop.f32.mrf.mxu0
  %v1262 = vadd.f32 0.0, %v1261
  %1263 = vmatmul.f32.gmra.mxu0 %v1052
  %v1264 = vpop.f32.mrf.mxu0
  %v1265 = vadd.f32 0.0, %v1264
  %1266 = vdwg.mxu0
  %v1267 = vadd.f32 %v928, %v1196
  %v1268 = vadd.f32 %v929, %v1199
  %v1269 = vadd.f32 %v930, %v1202
  %v1270 = vadd.f32 %v931, %v1205
  %v1271 = vadd.f32 %v932, %v1208
  %v1272 = vadd.f32 %v933, %v1211
  %v1273 = vadd.f32 %v934, %v1214
  %v1274 = vadd.f32 %v935, %v1217
  %v1275 = vadd.f32 %v936, %v1220
  %v1276 = vadd.f32 %v937, %v1223
  %v1277 = vadd.f32 %v938, %v1226
  %v1278 = vadd.f32 %v939, %v1229
  %v1279 = vadd.f32 %v940, %v1232
  %v1280 = vadd.f32 %v941, %v1235
  %v1281 = vadd.f32 %v942, %v1238
  %v1282 = vadd.f32 %v943, %v1241
  %v1283 = vadd.f32 %v944, %v1244
  %v1284 = vadd.f32 %v945, %v1247
  %v1285 = vadd.f32 %v946, %v1250
  %v1286 = vadd.f32 %v947, %v1253
  %v1287 = vadd.f32 %v948, %v1256
  %v1288 = vadd.f32 %v949, %v1259
  %v1289 = vadd.f32 %v950, %v1262
  %v1290 = vadd.f32 %v951, %v1265
  %s1291 = scalar_lea.vmem %s0, 32
  %v1292 = vld [vmem:[%s1291] sm:$0xff]
  %v1293 = vld [vmem:[%s1291 + $0x8] sm:$0xff]
  %v1294 = vld [vmem:[%s1291 + $0x10] sm:$0xff]
  %v1295 = vld [vmem:[%s1291 + $0x18] sm:$0xff]
  %v1296 = vld [vmem:[%s1291 + $0x20] sm:$0xff]
  %v1297 = vld [vmem:[%s1291 + $0x28] sm:$0xff]
  %v1298 = vld [vmem:[%s1291 + $0x30] sm:$0xff]
  %v1299 = vld [vmem:[%s1291 + $0x38] sm:$0xff]
  %v1300 = vld [vmem:[%s1291 + $0x40] sm:$0xff]
  %v1301 = vld [vmem:[%s1291 + $0x48] sm:$0xff]
  %v1302 = vld [vmem:[%s1291 + $0x50] sm:$0xff]
  %v1303 = vld [vmem:[%s1291 + $0x58] sm:$0xff]
  %v1304 = vld [vmem:[%s1291 + $0x60] sm:$0xff]
  %v1305 = vld [vmem:[%s1291 + $0x68] sm:$0xff]
  %v1306 = vld [vmem:[%s1291 + $0x70] sm:$0xff]
  %v1307 = vld [vmem:[%s1291 + $0x78] sm:$0xff]
  %v1308 = vld [vmem:[%s1291 + $0x80] sm:$0xff]
  %v1309 = vld [vmem:[%s1291 + $0x88] sm:$0xff]
  %v1310 = vld [vmem:[%s1291 + $0x90] sm:$0xff]
  %v1311 = vld [vmem:[%s1291 + $0x98] sm:$0xff]
  %v1312 = vld [vmem:[%s1291 + $0xa0] sm:$0xff]
  %v1313 = vld [vmem:[%s1291 + $0xa8] sm:$0xff]
  %v1314 = vld [vmem:[%s1291 + $0xb0] sm:$0xff]
  %v1315 = vld [vmem:[%s1291 + $0xb8] sm:$0xff]
  %s1316 = scalar_lea.vmem %s1, 128
  %v1317 = vld [vmem:[%s1316] sm:$0xff]
  %v1318 = vld [vmem:[%s1316 + $0x8] sm:$0xff]
  %v1319 = vld [vmem:[%s1316 + $0x10] sm:$0xff]
  %v1320 = vld [vmem:[%s1316 + $0x18] sm:$0xf]
  %v1322 = vsel %vm94, %v1292, 0
  %v1325 = vsel %vm94, %v1293, 0
  %v1328 = vsel %vm94, %v1294, 0
  %v1331 = vsel %vm94, %v1295, 0
  %v1334 = vsel %vm94, %v1296, 0
  %v1337 = vsel %vm94, %v1297, 0
  %v1340 = vsel %vm94, %v1298, 0
  %v1343 = vsel %vm94, %v1299, 0
  %v1346 = vsel %vm94, %v1300, 0
  %v1349 = vsel %vm94, %v1301, 0
  %v1352 = vsel %vm94, %v1302, 0
  %v1355 = vsel %vm94, %v1303, 0
  %v1358 = vsel %vm94, %v1304, 0
  %v1361 = vsel %vm94, %v1305, 0
  %v1364 = vsel %vm94, %v1306, 0
  %v1367 = vsel %vm94, %v1307, 0
  %v1370 = vsel %vm94, %v1308, 0
  %v1373 = vsel %vm94, %v1309, 0
  %v1376 = vsel %vm94, %v1310, 0
  %v1379 = vsel %vm94, %v1311, 0
  %v1382 = vsel %vm94, %v1312, 0
  %v1385 = vsel %vm94, %v1313, 0
  %v1388 = vsel %vm94, %v1314, 0
  %v1391 = vsel %vm94, %v1315, 0
  %v1394 = vsel %vm167, %v1320, 0
  %1396 = vmatpush.msra.mxu0 0.0
  %1397 = vmatpush.msra.mxu0 0.0
  %1398 = vmatpush.msra.mxu0 0.0
  %1399 = vmatpush.msra.mxu0 0.0
  %1400 = vmatpush.msra.mxu0 0.0
  %1401 = vmatpush.msra.mxu0 0.0
  %1402 = vmatpush.msra.mxu0 0.0
  %1403 = vmatpush.msra.mxu0 0.0
  %1404 = vmatpush.msra.mxu0 0.0
  %1405 = vmatpush.msra.mxu0 0.0
  %1406 = vmatpush.msra.mxu0 0.0
  %1407 = vmatpush.msra.mxu0 0.0
  %1408 = vmatpush.msra.mxu0 %v1394
  %1409 = vmatpush.msra.mxu0 %v1319
  %1410 = vmatpush.msra.mxu0 %v1318
  %1411 = vmatpush.msra.mxu0 %v1317
  %1412 = vmatmul.f32.gmra.mxu0 %v1322
  %v1413 = vpop.f32.mrf.mxu0
  %v1414 = vadd.f32 0.0, %v1413
  %1415 = vmatmul.f32.gmra.mxu0 %v1325
  %v1416 = vpop.f32.mrf.mxu0
  %v1417 = vadd.f32 0.0, %v1416
  %1418 = vmatmul.f32.gmra.mxu0 %v1328
  %v1419 = vpop.f32.mrf.mxu0
  %v1420 = vadd.f32 0.0, %v1419
  %1421 = vmatmul.f32.gmra.mxu0 %v1331
  %v1422 = vpop.f32.mrf.mxu0
  %v1423 = vadd.f32 0.0, %v1422
  %1424 = vmatmul.f32.gmra.mxu0 %v1334
  %v1425 = vpop.f32.mrf.mxu0
  %v1426 = vadd.f32 0.0, %v1425
  %1427 = vmatmul.f32.gmra.mxu0 %v1337
  %v1428 = vpop.f32.mrf.mxu0
  %v1429 = vadd.f32 0.0, %v1428
  %1430 = vmatmul.f32.gmra.mxu0 %v1340
  %v1431 = vpop.f32.mrf.mxu0
  %v1432 = vadd.f32 0.0, %v1431
  %1433 = vmatmul.f32.gmra.mxu0 %v1343
  %v1434 = vpop.f32.mrf.mxu0
  %v1435 = vadd.f32 0.0, %v1434
  %1436 = vmatmul.f32.gmra.mxu0 %v1346
  %v1437 = vpop.f32.mrf.mxu0
  %v1438 = vadd.f32 0.0, %v1437
  %1439 = vmatmul.f32.gmra.mxu0 %v1349
  %v1440 = vpop.f32.mrf.mxu0
  %v1441 = vadd.f32 0.0, %v1440
  %1442 = vmatmul.f32.gmra.mxu0 %v1352
  %v1443 = vpop.f32.mrf.mxu0
  %v1444 = vadd.f32 0.0, %v1443
  %1445 = vmatmul.f32.gmra.mxu0 %v1355
  %v1446 = vpop.f32.mrf.mxu0
  %v1447 = vadd.f32 0.0, %v1446
  %1448 = vmatmul.f32.gmra.mxu0 %v1358
  %v1449 = vpop.f32.mrf.mxu0
  %v1450 = vadd.f32 0.0, %v1449
  %1451 = vmatmul.f32.gmra.mxu0 %v1361
  %v1452 = vpop.f32.mrf.mxu0
  %v1453 = vadd.f32 0.0, %v1452
  %1454 = vmatmul.f32.gmra.mxu0 %v1364
  %v1455 = vpop.f32.mrf.mxu0
  %v1456 = vadd.f32 0.0, %v1455
  %1457 = vmatmul.f32.gmra.mxu0 %v1367
  %v1458 = vpop.f32.mrf.mxu0
  %v1459 = vadd.f32 0.0, %v1458
  %1460 = vmatmul.f32.gmra.mxu0 %v1370
  %v1461 = vpop.f32.mrf.mxu0
  %v1462 = vadd.f32 0.0, %v1461
  %1463 = vmatmul.f32.gmra.mxu0 %v1373
  %v1464 = vpop.f32.mrf.mxu0
  %v1465 = vadd.f32 0.0, %v1464
  %1466 = vmatmul.f32.gmra.mxu0 %v1376
  %v1467 = vpop.f32.mrf.mxu0
  %v1468 = vadd.f32 0.0, %v1467
  %1469 = vmatmul.f32.gmra.mxu0 %v1379
  %v1470 = vpop.f32.mrf.mxu0
  %v1471 = vadd.f32 0.0, %v1470
  %1472 = vmatmul.f32.gmra.mxu0 %v1382
  %v1473 = vpop.f32.mrf.mxu0
  %v1474 = vadd.f32 0.0, %v1473
  %1475 = vmatmul.f32.gmra.mxu0 %v1385
  %v1476 = vpop.f32.mrf.mxu0
  %v1477 = vadd.f32 0.0, %v1476
  %1478 = vmatmul.f32.gmra.mxu0 %v1388
  %v1479 = vpop.f32.mrf.mxu0
  %v1480 = vadd.f32 0.0, %v1479
  %1481 = vmatmul.f32.gmra.mxu0 %v1391
  %v1482 = vpop.f32.mrf.mxu0
  %v1483 = vadd.f32 0.0, %v1482
  %1484 = vdwg.mxu0
  %v1485 = vadd.f32 %v1146, %v1414
  %v1486 = vadd.f32 %v1147, %v1417
  %v1487 = vadd.f32 %v1148, %v1420
  %v1488 = vadd.f32 %v1149, %v1423
  %v1489 = vadd.f32 %v1150, %v1426
  %v1490 = vadd.f32 %v1151, %v1429
  %v1491 = vadd.f32 %v1152, %v1432
  %v1492 = vadd.f32 %v1153, %v1435
  %v1493 = vadd.f32 %v1154, %v1438
  %v1494 = vadd.f32 %v1155, %v1441
  %v1495 = vadd.f32 %v1156, %v1444
  %v1496 = vadd.f32 %v1157, %v1447
  %v1497 = vadd.f32 %v1158, %v1450
  %v1498 = vadd.f32 %v1159, %v1453
  %v1499 = vadd.f32 %v1160, %v1456
  %v1500 = vadd.f32 %v1161, %v1459
  %v1501 = vadd.f32 %v1162, %v1462
  %v1502 = vadd.f32 %v1163, %v1465
  %v1503 = vadd.f32 %v1164, %v1468
  %v1504 = vadd.f32 %v1165, %v1471
  %v1505 = vadd.f32 %v1166, %v1474
  %v1506 = vadd.f32 %v1167, %v1477
  %v1507 = vadd.f32 %v1168, %v1480
  %v1508 = vadd.f32 %v1169, %v1483
  %s1509 = scalar_lea.vmem %s2, 128
  %v1510 = vld [vmem:[%s1509] sm:$0xff]
  %v1511 = vld [vmem:[%s1509 + $0x8] sm:$0xff]
  %v1512 = vld [vmem:[%s1509 + $0x10] sm:$0xff]
  %v1513 = vld [vmem:[%s1509 + $0x18] sm:$0xf]
  %v1515 = vsel %vm167, %v1513, 0
  %1517 = vmatpush.msra.mxu0 0.0
  %1518 = vmatpush.msra.mxu0 0.0
  %1519 = vmatpush.msra.mxu0 0.0
  %1520 = vmatpush.msra.mxu0 0.0
  %1521 = vmatpush.msra.mxu0 0.0
  %1522 = vmatpush.msra.mxu0 0.0
  %1523 = vmatpush.msra.mxu0 0.0
  %1524 = vmatpush.msra.mxu0 0.0
  %1525 = vmatpush.msra.mxu0 0.0
  %1526 = vmatpush.msra.mxu0 0.0
  %1527 = vmatpush.msra.mxu0 0.0
  %1528 = vmatpush.msra.mxu0 0.0
  %1529 = vmatpush.msra.mxu0 %v1515
  %1530 = vmatpush.msra.mxu0 %v1512
  %1531 = vmatpush.msra.mxu0 %v1511
  %1532 = vmatpush.msra.mxu0 %v1510
  %1533 = vmatmul.f32.gmra.mxu0 %v1322
  %v1534 = vpop.f32.mrf.mxu0
  %v1535 = vadd.f32 0.0, %v1534
  %1536 = vmatmul.f32.gmra.mxu0 %v1325
  %v1537 = vpop.f32.mrf.mxu0
  %v1538 = vadd.f32 0.0, %v1537
  %1539 = vmatmul.f32.gmra.mxu0 %v1328
  %v1540 = vpop.f32.mrf.mxu0
  %v1541 = vadd.f32 0.0, %v1540
  %1542 = vmatmul.f32.gmra.mxu0 %v1331
  %v1543 = vpop.f32.mrf.mxu0
  %v1544 = vadd.f32 0.0, %v1543
  %1545 = vmatmul.f32.gmra.mxu0 %v1334
  %v1546 = vpop.f32.mrf.mxu0
  %v1547 = vadd.f32 0.0, %v1546
  %1548 = vmatmul.f32.gmra.mxu0 %v1337
  %v1549 = vpop.f32.mrf.mxu0
  %v1550 = vadd.f32 0.0, %v1549
  %1551 = vmatmul.f32.gmra.mxu0 %v1340
  %v1552 = vpop.f32.mrf.mxu0
  %v1553 = vadd.f32 0.0, %v1552
  %1554 = vmatmul.f32.gmra.mxu0 %v1343
  %v1555 = vpop.f32.mrf.mxu0
  %v1556 = vadd.f32 0.0, %v1555
  %1557 = vmatmul.f32.gmra.mxu0 %v1346
  %v1558 = vpop.f32.mrf.mxu0
  %v1559 = vadd.f32 0.0, %v1558
  %1560 = vmatmul.f32.gmra.mxu0 %v1349
  %v1561 = vpop.f32.mrf.mxu0
  %v1562 = vadd.f32 0.0, %v1561
  %1563 = vmatmul.f32.gmra.mxu0 %v1352
  %v1564 = vpop.f32.mrf.mxu0
  %v1565 = vadd.f32 0.0, %v1564
  %1566 = vmatmul.f32.gmra.mxu0 %v1355
  %v1567 = vpop.f32.mrf.mxu0
  %v1568 = vadd.f32 0.0, %v1567
  %1569 = vmatmul.f32.gmra.mxu0 %v1358
  %v1570 = vpop.f32.mrf.mxu0
  %v1571 = vadd.f32 0.0, %v1570
  %1572 = vmatmul.f32.gmra.mxu0 %v1361
  %v1573 = vpop.f32.mrf.mxu0
  %v1574 = vadd.f32 0.0, %v1573
  %1575 = vmatmul.f32.gmra.mxu0 %v1364
  %v1576 = vpop.f32.mrf.mxu0
  %v1577 = vadd.f32 0.0, %v1576
  %1578 = vmatmul.f32.gmra.mxu0 %v1367
  %v1579 = vpop.f32.mrf.mxu0
  %v1580 = vadd.f32 0.0, %v1579
  %1581 = vmatmul.f32.gmra.mxu0 %v1370
  %v1582 = vpop.f32.mrf.mxu0
  %v1583 = vadd.f32 0.0, %v1582
  %1584 = vmatmul.f32.gmra.mxu0 %v1373
  %v1585 = vpop.f32.mrf.mxu0
  %v1586 = vadd.f32 0.0, %v1585
  %1587 = vmatmul.f32.gmra.mxu0 %v1376
  %v1588 = vpop.f32.mrf.mxu0
  %v1589 = vadd.f32 0.0, %v1588
  %1590 = vmatmul.f32.gmra.mxu0 %v1379
  %v1591 = vpop.f32.mrf.mxu0
  %v1592 = vadd.f32 0.0, %v1591
  %1593 = vmatmul.f32.gmra.mxu0 %v1382
  %v1594 = vpop.f32.mrf.mxu0
  %v1595 = vadd.f32 0.0, %v1594
  %1596 = vmatmul.f32.gmra.mxu0 %v1385
  %v1597 = vpop.f32.mrf.mxu0
  %v1598 = vadd.f32 0.0, %v1597
  %1599 = vmatmul.f32.gmra.mxu0 %v1388
  %v1600 = vpop.f32.mrf.mxu0
  %v1601 = vadd.f32 0.0, %v1600
  %1602 = vmatmul.f32.gmra.mxu0 %v1391
  %v1603 = vpop.f32.mrf.mxu0
  %v1604 = vadd.f32 0.0, %v1603
  %1605 = vdwg.mxu0
  %v1606 = vadd.f32 %v1267, %v1535
  %v1607 = vadd.f32 %v1268, %v1538
  %v1608 = vadd.f32 %v1269, %v1541
  %v1609 = vadd.f32 %v1270, %v1544
  %v1610 = vadd.f32 %v1271, %v1547
  %v1611 = vadd.f32 %v1272, %v1550
  %v1612 = vadd.f32 %v1273, %v1553
  %v1613 = vadd.f32 %v1274, %v1556
  %v1614 = vadd.f32 %v1275, %v1559
  %v1615 = vadd.f32 %v1276, %v1562
  %v1616 = vadd.f32 %v1277, %v1565
  %v1617 = vadd.f32 %v1278, %v1568
  %v1618 = vadd.f32 %v1279, %v1571
  %v1619 = vadd.f32 %v1280, %v1574
  %v1620 = vadd.f32 %v1281, %v1577
  %v1621 = vadd.f32 %v1282, %v1580
  %v1622 = vadd.f32 %v1283, %v1583
  %v1623 = vadd.f32 %v1284, %v1586
  %v1624 = vadd.f32 %v1285, %v1589
  %v1625 = vadd.f32 %v1286, %v1592
  %v1626 = vadd.f32 %v1287, %v1595
  %v1627 = vadd.f32 %v1288, %v1598
  %v1628 = vadd.f32 %v1289, %v1601
  %v1629 = vadd.f32 %v1290, %v1604
  %v1630 = vld [vmem:[%s3] sm:$0x1]
  %v1632 = vperm.slane %v1630, 0
  %v1634 = vadd.f32 %v1485, %v1632
  %v1635 = vadd.f32 %v1486, %v1632
  %v1636 = vadd.f32 %v1487, %v1632
  %v1637 = vadd.f32 %v1488, %v1632
  %v1638 = vadd.f32 %v1489, %v1632
  %v1639 = vadd.f32 %v1490, %v1632
  %v1640 = vadd.f32 %v1491, %v1632
  %v1641 = vadd.f32 %v1492, %v1632
  %v1642 = vadd.f32 %v1493, %v1632
  %v1643 = vadd.f32 %v1494, %v1632
  %v1644 = vadd.f32 %v1495, %v1632
  %v1645 = vadd.f32 %v1496, %v1632
  %v1646 = vadd.f32 %v1497, %v1632
  %v1647 = vadd.f32 %v1498, %v1632
  %v1648 = vadd.f32 %v1499, %v1632
  %v1649 = vadd.f32 %v1500, %v1632
  %v1650 = vadd.f32 %v1501, %v1632
  %v1651 = vadd.f32 %v1502, %v1632
  %v1652 = vadd.f32 %v1503, %v1632
  %v1653 = vadd.f32 %v1504, %v1632
  %v1654 = vadd.f32 %v1505, %v1632
  %v1655 = vadd.f32 %v1506, %v1632
  %v1656 = vadd.f32 %v1507, %v1632
  %v1657 = vadd.f32 %v1508, %v1632
  %v1658 = vadd.f32 %v1606, %v1632
  %v1659 = vadd.f32 %v1607, %v1632
  %v1660 = vadd.f32 %v1608, %v1632
  %v1661 = vadd.f32 %v1609, %v1632
  %v1662 = vadd.f32 %v1610, %v1632
  %v1663 = vadd.f32 %v1611, %v1632
  %v1664 = vadd.f32 %v1612, %v1632
  %v1665 = vadd.f32 %v1613, %v1632
  %v1666 = vadd.f32 %v1614, %v1632
  %v1667 = vadd.f32 %v1615, %v1632
  %v1668 = vadd.f32 %v1616, %v1632
  %v1669 = vadd.f32 %v1617, %v1632
  %v1670 = vadd.f32 %v1618, %v1632
  %v1671 = vadd.f32 %v1619, %v1632
  %v1672 = vadd.f32 %v1620, %v1632
  %v1673 = vadd.f32 %v1621, %v1632
  %v1674 = vadd.f32 %v1622, %v1632
  %v1675 = vadd.f32 %v1623, %v1632
  %v1676 = vadd.f32 %v1624, %v1632
  %v1677 = vadd.f32 %v1625, %v1632
  %v1678 = vadd.f32 %v1626, %v1632
  %v1679 = vadd.f32 %v1627, %v1632
  %v1680 = vadd.f32 %v1628, %v1632
  %v1681 = vadd.f32 %v1629, %v1632
  %v1682 = vmax.f32 %v1634, %v1658
  %v1683 = vmax.f32 %v1635, %v1659
  %v1684 = vmax.f32 %v1636, %v1660
  %v1685 = vmax.f32 %v1637, %v1661
  %v1686 = vmax.f32 %v1638, %v1662
  %v1687 = vmax.f32 %v1639, %v1663
  %v1688 = vmax.f32 %v1640, %v1664
  %v1689 = vmax.f32 %v1641, %v1665
  %v1690 = vmax.f32 %v1642, %v1666
  %v1691 = vmax.f32 %v1643, %v1667
  %v1692 = vmax.f32 %v1644, %v1668
  %v1693 = vmax.f32 %v1645, %v1669
  %v1694 = vmax.f32 %v1646, %v1670
  %v1695 = vmax.f32 %v1647, %v1671
  %v1696 = vmax.f32 %v1648, %v1672
  %v1697 = vmax.f32 %v1649, %v1673
  %v1698 = vmax.f32 %v1650, %v1674
  %v1699 = vmax.f32 %v1651, %v1675
  %v1700 = vmax.f32 %v1652, %v1676
  %v1701 = vmax.f32 %v1653, %v1677
  %v1702 = vmax.f32 %v1654, %v1678
  %v1703 = vmax.f32 %v1655, %v1679
  %v1704 = vmax.f32 %v1656, %v1680
  %v1705 = vmax.f32 %v1657, %v1681
  %v1706 = vmax.f32 %v1682, %v1683
  %v1707 = vmax.f32 %v1684, %v1685
  %v1708 = vmax.f32 %v1686, %v1687
  %v1709 = vmax.f32 %v1688, %v1689
  %v1710 = vmax.f32 %v1690, %v1691
  %v1711 = vmax.f32 %v1692, %v1693
  %v1712 = vmax.f32 %v1694, %v1695
  %v1713 = vmax.f32 %v1696, %v1697
  %v1714 = vmax.f32 %v1698, %v1699
  %v1715 = vmax.f32 %v1700, %v1701
  %v1716 = vmax.f32 %v1702, %v1703
  %v1717 = vmax.f32 %v1704, %v1705
  %v1718 = vmax.f32 %v1706, 0.0
  %v1719 = vmax.f32 %v1707, 0.0
  %v1720 = vmax.f32 %v1708, 0.0
  %v1721 = vmax.f32 %v1709, 0.0
  %v1722 = vmax.f32 %v1710, 0.0
  %v1723 = vmax.f32 %v1711, 0.0
  %v1724 = vmax.f32 %v1712, 0.0
  %v1725 = vmax.f32 %v1713, 0.0
  %v1726 = vmax.f32 %v1714, 0.0
  %v1727 = vmax.f32 %v1715, 0.0
  %v1728 = vmax.f32 %v1716, 0.0
  %v1729 = vmax.f32 %v1717, 0.0
  %v1730 = vld [vmem:[%s4] sm:$0xff]
  %v1731 = vld [vmem:[%s4 + $0x8] sm:$0xff]
  %v1732 = vld [vmem:[%s4 + $0x10] sm:$0xff]
  %v1733 = vld [vmem:[%s4 + $0x18] sm:$0xff]
  %v1734 = vld [vmem:[%s4 + $0x20] sm:$0xff]
  %v1735 = vld [vmem:[%s4 + $0x28] sm:$0xff]
  %v1736 = vld [vmem:[%s4 + $0x30] sm:$0xff]
  %v1737 = vld [vmem:[%s4 + $0x38] sm:$0xff]
  %v1738 = vld [vmem:[%s4 + $0x40] sm:$0xff]
  %v1739 = vld [vmem:[%s4 + $0x48] sm:$0xff]
  %v1740 = vld [vmem:[%s4 + $0x50] sm:$0xff]
  %v1741 = vld [vmem:[%s4 + $0x58] sm:$0xff]
  %v1742 = vld [vmem:[%s4 + $0x60] sm:$0xff]
  %v1743 = vld [vmem:[%s4 + $0x68] sm:$0xff]
  %v1744 = vld [vmem:[%s4 + $0x70] sm:$0xff]
  %v1745 = vld [vmem:[%s5] sm:$0xff]
  %v1746 = vld [vmem:[%s5 + $0x8] sm:$0xff]
  %v1747 = vld [vmem:[%s5 + $0x10] sm:$0xff]
  %v1748 = vld [vmem:[%s5 + $0x18] sm:$0xff]
  %v1749 = vld [vmem:[%s5 + $0x20] sm:$0xff]
  %v1750 = vld [vmem:[%s5 + $0x28] sm:$0xff]
  %v1751 = vld [vmem:[%s5 + $0x30] sm:$0xff]
  %v1752 = vld [vmem:[%s5 + $0x38] sm:$0xff]
  %v1753 = vld [vmem:[%s5 + $0x40] sm:$0xff]
  %v1754 = vld [vmem:[%s5 + $0x48] sm:$0xff]
  %v1755 = vld [vmem:[%s5 + $0x50] sm:$0xff]
  %v1756 = vld [vmem:[%s5 + $0x58] sm:$0xff]
  %v1757 = vld [vmem:[%s5 + $0x60] sm:$0xff]
  %v1758 = vld [vmem:[%s5 + $0x68] sm:$0xff]
  %v1759 = vld [vmem:[%s5 + $0x70] sm:$0xff]
  %s1760 = scalar_lea.vmem %s4, 120
  %v1761 = vld [vmem:[%s1760] sm:$0xff]
  %v1762 = vld [vmem:[%s1760 + $0x8] sm:$0xff]
  %v1763 = vld [vmem:[%s1760 + $0x10] sm:$0xff]
  %v1764 = vld [vmem:[%s1760 + $0x18] sm:$0xff]
  %v1765 = vld [vmem:[%s1760 + $0x20] sm:$0xff]
  %v1766 = vld [vmem:[%s1760 + $0x28] sm:$0xff]
  %v1767 = vld [vmem:[%s1760 + $0x30] sm:$0xff]
  %v1768 = vld [vmem:[%s1760 + $0x38] sm:$0xff]
  %v1769 = vld [vmem:[%s1760 + $0x40] sm:$0xff]
  %v1770 = vld [vmem:[%s1760 + $0x48] sm:$0xff]
  %v1771 = vld [vmem:[%s1760 + $0x50] sm:$0xff]
  %v1772 = vld [vmem:[%s1760 + $0x58] sm:$0xff]
  %v1773 = vld [vmem:[%s1760 + $0x60] sm:$0xff]
  %v1774 = vld [vmem:[%s1760 + $0x68] sm:$0xff]
  %v1775 = vld [vmem:[%s1760 + $0x70] sm:$0xff]
  %vm1776 = vcmask 982016
  %v1778 = vsel %vm1776, %v1719, 0
  %v1781 = vsel %vm1776, %v1720, 0
  %v1784 = vsel %vm1776, %v1721, 0
  %v1787 = vsel %vm1776, %v1722, 0
  %v1790 = vsel %vm1776, %v1723, 0
  %v1793 = vsel %vm1776, %v1724, 0
  %v1796 = vsel %vm1776, %v1725, 0
  %v1799 = vsel %vm1776, %v1726, 0
  %1801 = vmatpush.msra.mxu0 0.0
  %1802 = vmatpush.msra.mxu0 %v1775
  %1803 = vmatpush.msra.mxu0 %v1774
  %1804 = vmatpush.msra.mxu0 %v1773
  %1805 = vmatpush.msra.mxu0 %v1772
  %1806 = vmatpush.msra.mxu0 %v1771
  %1807 = vmatpush.msra.mxu0 %v1770
  %1808 = vmatpush.msra.mxu0 %v1769
  %1809 = vmatpush.msra.mxu0 %v1768
  %1810 = vmatpush.msra.mxu0 %v1767
  %1811 = vmatpush.msra.mxu0 %v1766
  %1812 = vmatpush.msra.mxu0 %v1765
  %1813 = vmatpush.msra.mxu0 %v1764
  %1814 = vmatpush.msra.mxu0 %v1763
  %1815 = vmatpush.msra.mxu0 %v1762
  %1816 = vmatpush.msra.mxu0 %v1761
  %1817 = vmatmul.f32.gmra.mxu0 %v1778
  %v1818 = vpop.f32.mrf.mxu0
  %v1819 = vadd.f32 0.0, %v1818
  %1820 = vmatmul.f32.gmra.mxu0 %v1781
  %v1821 = vpop.f32.mrf.mxu0
  %v1822 = vadd.f32 0.0, %v1821
  %1823 = vmatmul.f32.gmra.mxu0 %v1784
  %v1824 = vpop.f32.mrf.mxu0
  %v1825 = vadd.f32 0.0, %v1824
  %1826 = vmatmul.f32.gmra.mxu0 %v1787
  %v1827 = vpop.f32.mrf.mxu0
  %v1828 = vadd.f32 0.0, %v1827
  %1829 = vmatmul.f32.gmra.mxu0 %v1790
  %v1830 = vpop.f32.mrf.mxu0
  %v1831 = vadd.f32 0.0, %v1830
  %1832 = vmatmul.f32.gmra.mxu0 %v1793
  %v1833 = vpop.f32.mrf.mxu0
  %v1834 = vadd.f32 0.0, %v1833
  %1835 = vmatmul.f32.gmra.mxu0 %v1796
  %v1836 = vpop.f32.mrf.mxu0
  %v1837 = vadd.f32 0.0, %v1836
  %1838 = vmatmul.f32.gmra.mxu0 %v1799
  %v1839 = vpop.f32.mrf.mxu0
  %v1840 = vadd.f32 0.0, %v1839
  %1841 = vdwg.mxu0
  %v1843 = vsel %vm1776, %v1718, 0
  %1845 = vmatpush.msra.mxu0 0.0
  %1846 = vmatpush.msra.mxu0 %v1744
  %1847 = vmatpush.msra.mxu0 %v1743
  %1848 = vmatpush.msra.mxu0 %v1742
  %1849 = vmatpush.msra.mxu0 %v1741
  %1850 = vmatpush.msra.mxu0 %v1740
  %1851 = vmatpush.msra.mxu0 %v1739
  %1852 = vmatpush.msra.mxu0 %v1738
  %1853 = vmatpush.msra.mxu0 %v1737
  %1854 = vmatpush.msra.mxu0 %v1736
  %1855 = vmatpush.msra.mxu0 %v1735
  %1856 = vmatpush.msra.mxu0 %v1734
  %1857 = vmatpush.msra.mxu0 %v1733
  %1858 = vmatpush.msra.mxu0 %v1732
  %1859 = vmatpush.msra.mxu0 %v1731
  %1860 = vmatpush.msra.mxu0 %v1730
  %1861 = vmatmul.f32.gmra.mxu0 %v1843
  %v1862 = vpop.f32.mrf.mxu0
  %v1863 = vadd.f32 %v1819, %v1862
  %1864 = vmatmul.f32.gmra.mxu0 %v1778
  %v1865 = vpop.f32.mrf.mxu0
  %v1866 = vadd.f32 %v1822, %v1865
  %1867 = vmatmul.f32.gmra.mxu0 %v1781
  %v1868 = vpop.f32.mrf.mxu0
  %v1869 = vadd.f32 %v1825, %v1868
  %1870 = vmatmul.f32.gmra.mxu0 %v1784
  %v1871 = vpop.f32.mrf.mxu0
  %v1872 = vadd.f32 %v1828, %v1871
  %1873 = vmatmul.f32.gmra.mxu0 %v1787
  %v1874 = vpop.f32.mrf.mxu0
  %v1875 = vadd.f32 %v1831, %v1874
  %1876 = vmatmul.f32.gmra.mxu0 %v1790
  %v1877 = vpop.f32.mrf.mxu0
  %v1878 = vadd.f32 %v1834, %v1877
  %1879 = vmatmul.f32.gmra.mxu0 %v1793
  %v1880 = vpop.f32.mrf.mxu0
  %v1881 = vadd.f32 %v1837, %v1880
  %1882 = vmatmul.f32.gmra.mxu0 %v1796
  %v1883 = vpop.f32.mrf.mxu0
  %v1884 = vadd.f32 %v1840, %v1883
  %1885 = vdwg.mxu0
  %s1886 = scalar_lea.vmem %s5, 120
  %v1887 = vld [vmem:[%s1886] sm:$0xff]
  %v1888 = vld [vmem:[%s1886 + $0x8] sm:$0xff]
  %v1889 = vld [vmem:[%s1886 + $0x10] sm:$0xff]
  %v1890 = vld [vmem:[%s1886 + $0x18] sm:$0xff]
  %v1891 = vld [vmem:[%s1886 + $0x20] sm:$0xff]
  %v1892 = vld [vmem:[%s1886 + $0x28] sm:$0xff]
  %v1893 = vld [vmem:[%s1886 + $0x30] sm:$0xff]
  %v1894 = vld [vmem:[%s1886 + $0x38] sm:$0xff]
  %v1895 = vld [vmem:[%s1886 + $0x40] sm:$0xff]
  %v1896 = vld [vmem:[%s1886 + $0x48] sm:$0xff]
  %v1897 = vld [vmem:[%s1886 + $0x50] sm:$0xff]
  %v1898 = vld [vmem:[%s1886 + $0x58] sm:$0xff]
  %v1899 = vld [vmem:[%s1886 + $0x60] sm:$0xff]
  %v1900 = vld [vmem:[%s1886 + $0x68] sm:$0xff]
  %v1901 = vld [vmem:[%s1886 + $0x70] sm:$0xff]
  %1902 = vmatpush.msra.mxu0 0.0
  %1903 = vmatpush.msra.mxu0 %v1901
  %1904 = vmatpush.msra.mxu0 %v1900
  %1905 = vmatpush.msra.mxu0 %v1899
  %1906 = vmatpush.msra.mxu0 %v1898
  %1907 = vmatpush.msra.mxu0 %v1897
  %1908 = vmatpush.msra.mxu0 %v1896
  %1909 = vmatpush.msra.mxu0 %v1895
  %1910 = vmatpush.msra.mxu0 %v1894
  %1911 = vmatpush.msra.mxu0 %v1893
  %1912 = vmatpush.msra.mxu0 %v1892
  %1913 = vmatpush.msra.mxu0 %v1891
  %1914 = vmatpush.msra.mxu0 %v1890
  %1915 = vmatpush.msra.mxu0 %v1889
  %1916 = vmatpush.msra.mxu0 %v1888
  %1917 = vmatpush.msra.mxu0 %v1887
  %1918 = vmatmul.f32.gmra.mxu0 %v1778
  %v1919 = vpop.f32.mrf.mxu0
  %v1920 = vadd.f32 0.0, %v1919
  %1921 = vmatmul.f32.gmra.mxu0 %v1781
  %v1922 = vpop.f32.mrf.mxu0
  %v1923 = vadd.f32 0.0, %v1922
  %1924 = vmatmul.f32.gmra.mxu0 %v1784
  %v1925 = vpop.f32.mrf.mxu0
  %v1926 = vadd.f32 0.0, %v1925
  %1927 = vmatmul.f32.gmra.mxu0 %v1787
  %v1928 = vpop.f32.mrf.mxu0
  %v1929 = vadd.f32 0.0, %v1928
  %1930 = vmatmul.f32.gmra.mxu0 %v1790
  %v1931 = vpop.f32.mrf.mxu0
  %v1932 = vadd.f32 0.0, %v1931
  %1933 = vmatmul.f32.gmra.mxu0 %v1793
  %v1934 = vpop.f32.mrf.mxu0
  %v1935 = vadd.f32 0.0, %v1934
  %1936 = vmatmul.f32.gmra.mxu0 %v1796
  %v1937 = vpop.f32.mrf.mxu0
  %v1938 = vadd.f32 0.0, %v1937
  %1939 = vmatmul.f32.gmra.mxu0 %v1799
  %v1940 = vpop.f32.mrf.mxu0
  %v1941 = vadd.f32 0.0, %v1940
  %1942 = vdwg.mxu0
  %1943 = vmatpush.msra.mxu0 0.0
  %1944 = vmatpush.msra.mxu0 %v1759
  %1945 = vmatpush.msra.mxu0 %v1758
  %1946 = vmatpush.msra.mxu0 %v1757
  %1947 = vmatpush.msra.mxu0 %v1756
  %1948 = vmatpush.msra.mxu0 %v1755
  %1949 = vmatpush.msra.mxu0 %v1754
  %1950 = vmatpush.msra.mxu0 %v1753
  %1951 = vmatpush.msra.mxu0 %v1752
  %1952 = vmatpush.msra.mxu0 %v1751
  %1953 = vmatpush.msra.mxu0 %v1750
  %1954 = vmatpush.msra.mxu0 %v1749
  %1955 = vmatpush.msra.mxu0 %v1748
  %1956 = vmatpush.msra.mxu0 %v1747
  %1957 = vmatpush.msra.mxu0 %v1746
  %1958 = vmatpush.msra.mxu0 %v1745
  %1959 = vmatmul.f32.gmra.mxu0 %v1843
  %v1960 = vpop.f32.mrf.mxu0
  %v1961 = vadd.f32 %v1920, %v1960
  %1962 = vmatmul.f32.gmra.mxu0 %v1778
  %v1963 = vpop.f32.mrf.mxu0
  %v1964 = vadd.f32 %v1923, %v1963
  %1965 = vmatmul.f32.gmra.mxu0 %v1781
  %v1966 = vpop.f32.mrf.mxu0
  %v1967 = vadd.f32 %v1926, %v1966
  %1968 = vmatmul.f32.gmra.mxu0 %v1784
  %v1969 = vpop.f32.mrf.mxu0
  %v1970 = vadd.f32 %v1929, %v1969
  %1971 = vmatmul.f32.gmra.mxu0 %v1787
  %v1972 = vpop.f32.mrf.mxu0
  %v1973 = vadd.f32 %v1932, %v1972
  %1974 = vmatmul.f32.gmra.mxu0 %v1790
  %v1975 = vpop.f32.mrf.mxu0
  %v1976 = vadd.f32 %v1935, %v1975
  %1977 = vmatmul.f32.gmra.mxu0 %v1793
  %v1978 = vpop.f32.mrf.mxu0
  %v1979 = vadd.f32 %v1938, %v1978
  %1980 = vmatmul.f32.gmra.mxu0 %v1796
  %v1981 = vpop.f32.mrf.mxu0
  %v1982 = vadd.f32 %v1941, %v1981
  %1983 = vdwg.mxu0
  %s1984 = scalar_lea.vmem %s4, 240
  %v1985 = vld [vmem:[%s1984] sm:$0xff]
  %v1986 = vld [vmem:[%s1984 + $0x8] sm:$0xff]
  %v1987 = vld [vmem:[%s1984 + $0x10] sm:$0xff]
  %v1988 = vld [vmem:[%s1984 + $0x18] sm:$0xff]
  %v1989 = vld [vmem:[%s1984 + $0x20] sm:$0xff]
  %v1990 = vld [vmem:[%s1984 + $0x28] sm:$0xff]
  %v1991 = vld [vmem:[%s1984 + $0x30] sm:$0xff]
  %v1992 = vld [vmem:[%s1984 + $0x38] sm:$0xff]
  %v1993 = vld [vmem:[%s1984 + $0x40] sm:$0xff]
  %v1994 = vld [vmem:[%s1984 + $0x48] sm:$0xff]
  %v1995 = vld [vmem:[%s1984 + $0x50] sm:$0xff]
  %v1996 = vld [vmem:[%s1984 + $0x58] sm:$0xff]
  %v1997 = vld [vmem:[%s1984 + $0x60] sm:$0xff]
  %v1998 = vld [vmem:[%s1984 + $0x68] sm:$0xff]
  %v1999 = vld [vmem:[%s1984 + $0x70] sm:$0xff]
  %v2001 = vsel %vm1776, %v1727, 0
  %2003 = vmatpush.msra.mxu0 0.0
  %2004 = vmatpush.msra.mxu0 %v1999
  %2005 = vmatpush.msra.mxu0 %v1998
  %2006 = vmatpush.msra.mxu0 %v1997
  %2007 = vmatpush.msra.mxu0 %v1996
  %2008 = vmatpush.msra.mxu0 %v1995
  %2009 = vmatpush.msra.mxu0 %v1994
  %2010 = vmatpush.msra.mxu0 %v1993
  %2011 = vmatpush.msra.mxu0 %v1992
  %2012 = vmatpush.msra.mxu0 %v1991
  %2013 = vmatpush.msra.mxu0 %v1990
  %2014 = vmatpush.msra.mxu0 %v1989
  %2015 = vmatpush.msra.mxu0 %v1988
  %2016 = vmatpush.msra.mxu0 %v1987
  %2017 = vmatpush.msra.mxu0 %v1986
  %2018 = vmatpush.msra.mxu0 %v1985
  %2019 = vmatmul.f32.gmra.mxu0 %v1781
  %v2020 = vpop.f32.mrf.mxu0
  %v2021 = vadd.f32 0.0, %v2020
  %2022 = vmatmul.f32.gmra.mxu0 %v1784
  %v2023 = vpop.f32.mrf.mxu0
  %v2024 = vadd.f32 0.0, %v2023
  %2025 = vmatmul.f32.gmra.mxu0 %v1787
  %v2026 = vpop.f32.mrf.mxu0
  %v2027 = vadd.f32 0.0, %v2026
  %2028 = vmatmul.f32.gmra.mxu0 %v1790
  %v2029 = vpop.f32.mrf.mxu0
  %v2030 = vadd.f32 0.0, %v2029
  %2031 = vmatmul.f32.gmra.mxu0 %v1793
  %v2032 = vpop.f32.mrf.mxu0
  %v2033 = vadd.f32 0.0, %v2032
  %2034 = vmatmul.f32.gmra.mxu0 %v1796
  %v2035 = vpop.f32.mrf.mxu0
  %v2036 = vadd.f32 0.0, %v2035
  %2037 = vmatmul.f32.gmra.mxu0 %v1799
  %v2038 = vpop.f32.mrf.mxu0
  %v2039 = vadd.f32 0.0, %v2038
  %2040 = vmatmul.f32.gmra.mxu0 %v2001
  %v2041 = vpop.f32.mrf.mxu0
  %v2042 = vadd.f32 0.0, %v2041
  %2043 = vdwg.mxu0
  %v2044 = vadd.f32 %v1863, %v2021
  %v2045 = vadd.f32 %v1866, %v2024
  %v2046 = vadd.f32 %v1869, %v2027
  %v2047 = vadd.f32 %v1872, %v2030
  %v2048 = vadd.f32 %v1875, %v2033
  %v2049 = vadd.f32 %v1878, %v2036
  %v2050 = vadd.f32 %v1881, %v2039
  %v2051 = vadd.f32 %v1884, %v2042
  %s2052 = scalar_lea.vmem %s5, 240
  %v2053 = vld [vmem:[%s2052] sm:$0xff]
  %v2054 = vld [vmem:[%s2052 + $0x8] sm:$0xff]
  %v2055 = vld [vmem:[%s2052 + $0x10] sm:$0xff]
  %v2056 = vld [vmem:[%s2052 + $0x18] sm:$0xff]
  %v2057 = vld [vmem:[%s2052 + $0x20] sm:$0xff]
  %v2058 = vld [vmem:[%s2052 + $0x28] sm:$0xff]
  %v2059 = vld [vmem:[%s2052 + $0x30] sm:$0xff]
  %v2060 = vld [vmem:[%s2052 + $0x38] sm:$0xff]
  %v2061 = vld [vmem:[%s2052 + $0x40] sm:$0xff]
  %v2062 = vld [vmem:[%s2052 + $0x48] sm:$0xff]
  %v2063 = vld [vmem:[%s2052 + $0x50] sm:$0xff]
  %v2064 = vld [vmem:[%s2052 + $0x58] sm:$0xff]
  %v2065 = vld [vmem:[%s2052 + $0x60] sm:$0xff]
  %v2066 = vld [vmem:[%s2052 + $0x68] sm:$0xff]
  %v2067 = vld [vmem:[%s2052 + $0x70] sm:$0xff]
  %2068 = vmatpush.msra.mxu0 0.0
  %2069 = vmatpush.msra.mxu0 %v2067
  %2070 = vmatpush.msra.mxu0 %v2066
  %2071 = vmatpush.msra.mxu0 %v2065
  %2072 = vmatpush.msra.mxu0 %v2064
  %2073 = vmatpush.msra.mxu0 %v2063
  %2074 = vmatpush.msra.mxu0 %v2062
  %2075 = vmatpush.msra.mxu0 %v2061
  %2076 = vmatpush.msra.mxu0 %v2060
  %2077 = vmatpush.msra.mxu0 %v2059
  %2078 = vmatpush.msra.mxu0 %v2058
  %2079 = vmatpush.msra.mxu0 %v2057
  %2080 = vmatpush.msra.mxu0 %v2056
  %2081 = vmatpush.msra.mxu0 %v2055
  %2082 = vmatpush.msra.mxu0 %v2054
  %2083 = vmatpush.msra.mxu0 %v2053
  %2084 = vmatmul.f32.gmra.mxu0 %v1781
  %v2085 = vpop.f32.mrf.mxu0
  %v2086 = vadd.f32 0.0, %v2085
  %2087 = vmatmul.f32.gmra.mxu0 %v1784
  %v2088 = vpop.f32.mrf.mxu0
  %v2089 = vadd.f32 0.0, %v2088
  %2090 = vmatmul.f32.gmra.mxu0 %v1787
  %v2091 = vpop.f32.mrf.mxu0
  %v2092 = vadd.f32 0.0, %v2091
  %2093 = vmatmul.f32.gmra.mxu0 %v1790
  %v2094 = vpop.f32.mrf.mxu0
  %v2095 = vadd.f32 0.0, %v2094
  %2096 = vmatmul.f32.gmra.mxu0 %v1793
  %v2097 = vpop.f32.mrf.mxu0
  %v2098 = vadd.f32 0.0, %v2097
  %2099 = vmatmul.f32.gmra.mxu0 %v1796
  %v2100 = vpop.f32.mrf.mxu0
  %v2101 = vadd.f32 0.0, %v2100
  %2102 = vmatmul.f32.gmra.mxu0 %v1799
  %v2103 = vpop.f32.mrf.mxu0
  %v2104 = vadd.f32 0.0, %v2103
  %2105 = vmatmul.f32.gmra.mxu0 %v2001
  %v2106 = vpop.f32.mrf.mxu0
  %v2107 = vadd.f32 0.0, %v2106
  %2108 = vdwg.mxu0
  %v2109 = vadd.f32 %v1961, %v2086
  %v2110 = vadd.f32 %v1964, %v2089
  %v2111 = vadd.f32 %v1967, %v2092
  %v2112 = vadd.f32 %v1970, %v2095
  %v2113 = vadd.f32 %v1973, %v2098
  %v2114 = vadd.f32 %v1976, %v2101
  %v2115 = vadd.f32 %v1979, %v2104
  %v2116 = vadd.f32 %v1982, %v2107
  %s2117 = scalar_lea.vmem %s4, 360
  %v2118 = vld [vmem:[%s2117] sm:$0xff]
  %v2119 = vld [vmem:[%s2117 + $0x8] sm:$0xff]
  %v2120 = vld [vmem:[%s2117 + $0x10] sm:$0xff]
  %v2121 = vld [vmem:[%s2117 + $0x18] sm:$0xff]
  %v2122 = vld [vmem:[%s2117 + $0x20] sm:$0xff]
  %v2123 = vld [vmem:[%s2117 + $0x28] sm:$0xff]
  %v2124 = vld [vmem:[%s2117 + $0x30] sm:$0xff]
  %v2125 = vld [vmem:[%s2117 + $0x38] sm:$0xff]
  %v2126 = vld [vmem:[%s2117 + $0x40] sm:$0xff]
  %v2127 = vld [vmem:[%s2117 + $0x48] sm:$0xff]
  %v2128 = vld [vmem:[%s2117 + $0x50] sm:$0xff]
  %v2129 = vld [vmem:[%s2117 + $0x58] sm:$0xff]
  %v2130 = vld [vmem:[%s2117 + $0x60] sm:$0xff]
  %v2131 = vld [vmem:[%s2117 + $0x68] sm:$0xff]
  %v2132 = vld [vmem:[%s2117 + $0x70] sm:$0xff]
  %v2134 = vsel %vm1776, %v1728, 0
  %2136 = vmatpush.msra.mxu0 0.0
  %2137 = vmatpush.msra.mxu0 %v2132
  %2138 = vmatpush.msra.mxu0 %v2131
  %2139 = vmatpush.msra.mxu0 %v2130
  %2140 = vmatpush.msra.mxu0 %v2129
  %2141 = vmatpush.msra.mxu0 %v2128
  %2142 = vmatpush.msra.mxu0 %v2127
  %2143 = vmatpush.msra.mxu0 %v2126
  %2144 = vmatpush.msra.mxu0 %v2125
  %2145 = vmatpush.msra.mxu0 %v2124
  %2146 = vmatpush.msra.mxu0 %v2123
  %2147 = vmatpush.msra.mxu0 %v2122
  %2148 = vmatpush.msra.mxu0 %v2121
  %2149 = vmatpush.msra.mxu0 %v2120
  %2150 = vmatpush.msra.mxu0 %v2119
  %2151 = vmatpush.msra.mxu0 %v2118
  %2152 = vmatmul.f32.gmra.mxu0 %v1784
  %v2153 = vpop.f32.mrf.mxu0
  %v2154 = vadd.f32 0.0, %v2153
  %2155 = vmatmul.f32.gmra.mxu0 %v1787
  %v2156 = vpop.f32.mrf.mxu0
  %v2157 = vadd.f32 0.0, %v2156
  %2158 = vmatmul.f32.gmra.mxu0 %v1790
  %v2159 = vpop.f32.mrf.mxu0
  %v2160 = vadd.f32 0.0, %v2159
  %2161 = vmatmul.f32.gmra.mxu0 %v1793
  %v2162 = vpop.f32.mrf.mxu0
  %v2163 = vadd.f32 0.0, %v2162
  %2164 = vmatmul.f32.gmra.mxu0 %v1796
  %v2165 = vpop.f32.mrf.mxu0
  %v2166 = vadd.f32 0.0, %v2165
  %2167 = vmatmul.f32.gmra.mxu0 %v1799
  %v2168 = vpop.f32.mrf.mxu0
  %v2169 = vadd.f32 0.0, %v2168
  %2170 = vmatmul.f32.gmra.mxu0 %v2001
  %v2171 = vpop.f32.mrf.mxu0
  %v2172 = vadd.f32 0.0, %v2171
  %2173 = vmatmul.f32.gmra.mxu0 %v2134
  %v2174 = vpop.f32.mrf.mxu0
  %v2175 = vadd.f32 0.0, %v2174
  %2176 = vdwg.mxu0
  %v2177 = vadd.f32 %v2044, %v2154
  %v2178 = vadd.f32 %v2045, %v2157
  %v2179 = vadd.f32 %v2046, %v2160
  %v2180 = vadd.f32 %v2047, %v2163
  %v2181 = vadd.f32 %v2048, %v2166
  %v2182 = vadd.f32 %v2049, %v2169
  %v2183 = vadd.f32 %v2050, %v2172
  %v2184 = vadd.f32 %v2051, %v2175
  %s2185 = scalar_lea.vmem %s5, 360
  %v2186 = vld [vmem:[%s2185] sm:$0xff]
  %v2187 = vld [vmem:[%s2185 + $0x8] sm:$0xff]
  %v2188 = vld [vmem:[%s2185 + $0x10] sm:$0xff]
  %v2189 = vld [vmem:[%s2185 + $0x18] sm:$0xff]
  %v2190 = vld [vmem:[%s2185 + $0x20] sm:$0xff]
  %v2191 = vld [vmem:[%s2185 + $0x28] sm:$0xff]
  %v2192 = vld [vmem:[%s2185 + $0x30] sm:$0xff]
  %v2193 = vld [vmem:[%s2185 + $0x38] sm:$0xff]
  %v2194 = vld [vmem:[%s2185 + $0x40] sm:$0xff]
  %v2195 = vld [vmem:[%s2185 + $0x48] sm:$0xff]
  %v2196 = vld [vmem:[%s2185 + $0x50] sm:$0xff]
  %v2197 = vld [vmem:[%s2185 + $0x58] sm:$0xff]
  %v2198 = vld [vmem:[%s2185 + $0x60] sm:$0xff]
  %v2199 = vld [vmem:[%s2185 + $0x68] sm:$0xff]
  %v2200 = vld [vmem:[%s2185 + $0x70] sm:$0xff]
  %2201 = vmatpush.msra.mxu0 0.0
  %2202 = vmatpush.msra.mxu0 %v2200
  %2203 = vmatpush.msra.mxu0 %v2199
  %2204 = vmatpush.msra.mxu0 %v2198
  %2205 = vmatpush.msra.mxu0 %v2197
  %2206 = vmatpush.msra.mxu0 %v2196
  %2207 = vmatpush.msra.mxu0 %v2195
  %2208 = vmatpush.msra.mxu0 %v2194
  %2209 = vmatpush.msra.mxu0 %v2193
  %2210 = vmatpush.msra.mxu0 %v2192
  %2211 = vmatpush.msra.mxu0 %v2191
  %2212 = vmatpush.msra.mxu0 %v2190
  %2213 = vmatpush.msra.mxu0 %v2189
  %2214 = vmatpush.msra.mxu0 %v2188
  %2215 = vmatpush.msra.mxu0 %v2187
  %2216 = vmatpush.msra.mxu0 %v2186
  %2217 = vmatmul.f32.gmra.mxu0 %v1784
  %v2218 = vpop.f32.mrf.mxu0
  %v2219 = vadd.f32 0.0, %v2218
  %2220 = vmatmul.f32.gmra.mxu0 %v1787
  %v2221 = vpop.f32.mrf.mxu0
  %v2222 = vadd.f32 0.0, %v2221
  %2223 = vmatmul.f32.gmra.mxu0 %v1790
  %v2224 = vpop.f32.mrf.mxu0
  %v2225 = vadd.f32 0.0, %v2224
  %2226 = vmatmul.f32.gmra.mxu0 %v1793
  %v2227 = vpop.f32.mrf.mxu0
  %v2228 = vadd.f32 0.0, %v2227
  %2229 = vmatmul.f32.gmra.mxu0 %v1796
  %v2230 = vpop.f32.mrf.mxu0
  %v2231 = vadd.f32 0.0, %v2230
  %2232 = vmatmul.f32.gmra.mxu0 %v1799
  %v2233 = vpop.f32.mrf.mxu0
  %v2234 = vadd.f32 0.0, %v2233
  %2235 = vmatmul.f32.gmra.mxu0 %v2001
  %v2236 = vpop.f32.mrf.mxu0
  %v2237 = vadd.f32 0.0, %v2236
  %2238 = vmatmul.f32.gmra.mxu0 %v2134
  %v2239 = vpop.f32.mrf.mxu0
  %v2240 = vadd.f32 0.0, %v2239
  %2241 = vdwg.mxu0
  %v2242 = vadd.f32 %v2109, %v2219
  %v2243 = vadd.f32 %v2110, %v2222
  %v2244 = vadd.f32 %v2111, %v2225
  %v2245 = vadd.f32 %v2112, %v2228
  %v2246 = vadd.f32 %v2113, %v2231
  %v2247 = vadd.f32 %v2114, %v2234
  %v2248 = vadd.f32 %v2115, %v2237
  %v2249 = vadd.f32 %v2116, %v2240
  %s2250 = scalar_lea.vmem %s4, 480
  %v2251 = vld [vmem:[%s2250] sm:$0xff]
  %v2252 = vld [vmem:[%s2250 + $0x8] sm:$0xff]
  %v2253 = vld [vmem:[%s2250 + $0x10] sm:$0xff]
  %v2254 = vld [vmem:[%s2250 + $0x18] sm:$0xff]
  %v2255 = vld [vmem:[%s2250 + $0x20] sm:$0xff]
  %v2256 = vld [vmem:[%s2250 + $0x28] sm:$0xff]
  %v2257 = vld [vmem:[%s2250 + $0x30] sm:$0xff]
  %v2258 = vld [vmem:[%s2250 + $0x38] sm:$0xff]
  %v2259 = vld [vmem:[%s2250 + $0x40] sm:$0xff]
  %v2260 = vld [vmem:[%s2250 + $0x48] sm:$0xff]
  %v2261 = vld [vmem:[%s2250 + $0x50] sm:$0xff]
  %v2262 = vld [vmem:[%s2250 + $0x58] sm:$0xff]
  %v2263 = vld [vmem:[%s2250 + $0x60] sm:$0xff]
  %v2264 = vld [vmem:[%s2250 + $0x68] sm:$0xff]
  %v2265 = vld [vmem:[%s2250 + $0x70] sm:$0xff]
  %v2267 = vsel %vm1776, %v1729, 0
  %2269 = vmatpush.msra.mxu0 0.0
  %2270 = vmatpush.msra.mxu0 %v2265
  %2271 = vmatpush.msra.mxu0 %v2264
  %2272 = vmatpush.msra.mxu0 %v2263
  %2273 = vmatpush.msra.mxu0 %v2262
  %2274 = vmatpush.msra.mxu0 %v2261
  %2275 = vmatpush.msra.mxu0 %v2260
  %2276 = vmatpush.msra.mxu0 %v2259
  %2277 = vmatpush.msra.mxu0 %v2258
  %2278 = vmatpush.msra.mxu0 %v2257
  %2279 = vmatpush.msra.mxu0 %v2256
  %2280 = vmatpush.msra.mxu0 %v2255
  %2281 = vmatpush.msra.mxu0 %v2254
  %2282 = vmatpush.msra.mxu0 %v2253
  %2283 = vmatpush.msra.mxu0 %v2252
  %2284 = vmatpush.msra.mxu0 %v2251
  %2285 = vmatmul.f32.gmra.mxu0 %v1787
  %v2286 = vpop.f32.mrf.mxu0
  %v2287 = vadd.f32 0.0, %v2286
  %2288 = vmatmul.f32.gmra.mxu0 %v1790
  %v2289 = vpop.f32.mrf.mxu0
  %v2290 = vadd.f32 0.0, %v2289
  %2291 = vmatmul.f32.gmra.mxu0 %v1793
  %v2292 = vpop.f32.mrf.mxu0
  %v2293 = vadd.f32 0.0, %v2292
  %2294 = vmatmul.f32.gmra.mxu0 %v1796
  %v2295 = vpop.f32.mrf.mxu0
  %v2296 = vadd.f32 0.0, %v2295
  %2297 = vmatmul.f32.gmra.mxu0 %v1799
  %v2298 = vpop.f32.mrf.mxu0
  %v2299 = vadd.f32 0.0, %v2298
  %2300 = vmatmul.f32.gmra.mxu0 %v2001
  %v2301 = vpop.f32.mrf.mxu0
  %v2302 = vadd.f32 0.0, %v2301
  %2303 = vmatmul.f32.gmra.mxu0 %v2134
  %v2304 = vpop.f32.mrf.mxu0
  %v2305 = vadd.f32 0.0, %v2304
  %2306 = vmatmul.f32.gmra.mxu0 %v2267
  %v2307 = vpop.f32.mrf.mxu0
  %v2308 = vadd.f32 0.0, %v2307
  %2309 = vdwg.mxu0
  %v2310 = vadd.f32 %v2177, %v2287
  %v2311 = vadd.f32 %v2178, %v2290
  %v2312 = vadd.f32 %v2179, %v2293
  %v2313 = vadd.f32 %v2180, %v2296
  %v2314 = vadd.f32 %v2181, %v2299
  %v2315 = vadd.f32 %v2182, %v2302
  %v2316 = vadd.f32 %v2183, %v2305
  %v2317 = vadd.f32 %v2184, %v2308
  %s2318 = scalar_lea.vmem %s5, 480
  %v2319 = vld [vmem:[%s2318] sm:$0xff]
  %v2320 = vld [vmem:[%s2318 + $0x8] sm:$0xff]
  %v2321 = vld [vmem:[%s2318 + $0x10] sm:$0xff]
  %v2322 = vld [vmem:[%s2318 + $0x18] sm:$0xff]
  %v2323 = vld [vmem:[%s2318 + $0x20] sm:$0xff]
  %v2324 = vld [vmem:[%s2318 + $0x28] sm:$0xff]
  %v2325 = vld [vmem:[%s2318 + $0x30] sm:$0xff]
  %v2326 = vld [vmem:[%s2318 + $0x38] sm:$0xff]
  %v2327 = vld [vmem:[%s2318 + $0x40] sm:$0xff]
  %v2328 = vld [vmem:[%s2318 + $0x48] sm:$0xff]
  %v2329 = vld [vmem:[%s2318 + $0x50] sm:$0xff]
  %v2330 = vld [vmem:[%s2318 + $0x58] sm:$0xff]
  %v2331 = vld [vmem:[%s2318 + $0x60] sm:$0xff]
  %v2332 = vld [vmem:[%s2318 + $0x68] sm:$0xff]
  %v2333 = vld [vmem:[%s2318 + $0x70] sm:$0xff]
  %2334 = vmatpush.msra.mxu0 0.0
  %2335 = vmatpush.msra.mxu0 %v2333
  %2336 = vmatpush.msra.mxu0 %v2332
  %2337 = vmatpush.msra.mxu0 %v2331
  %2338 = vmatpush.msra.mxu0 %v2330
  %2339 = vmatpush.msra.mxu0 %v2329
  %2340 = vmatpush.msra.mxu0 %v2328
  %2341 = vmatpush.msra.mxu0 %v2327
  %2342 = vmatpush.msra.mxu0 %v2326
  %2343 = vmatpush.msra.mxu0 %v2325
  %2344 = vmatpush.msra.mxu0 %v2324
  %2345 = vmatpush.msra.mxu0 %v2323
  %2346 = vmatpush.msra.mxu0 %v2322
  %2347 = vmatpush.msra.mxu0 %v2321
  %2348 = vmatpush.msra.mxu0 %v2320
  %2349 = vmatpush.msra.mxu0 %v2319
  %2350 = vmatmul.f32.gmra.mxu0 %v1787
  %v2351 = vpop.f32.mrf.mxu0
  %v2352 = vadd.f32 0.0, %v2351
  %2353 = vmatmul.f32.gmra.mxu0 %v1790
  %v2354 = vpop.f32.mrf.mxu0
  %v2355 = vadd.f32 0.0, %v2354
  %2356 = vmatmul.f32.gmra.mxu0 %v1793
  %v2357 = vpop.f32.mrf.mxu0
  %v2358 = vadd.f32 0.0, %v2357
  %2359 = vmatmul.f32.gmra.mxu0 %v1796
  %v2360 = vpop.f32.mrf.mxu0
  %v2361 = vadd.f32 0.0, %v2360
  %2362 = vmatmul.f32.gmra.mxu0 %v1799
  %v2363 = vpop.f32.mrf.mxu0
  %v2364 = vadd.f32 0.0, %v2363
  %2365 = vmatmul.f32.gmra.mxu0 %v2001
  %v2366 = vpop.f32.mrf.mxu0
  %v2367 = vadd.f32 0.0, %v2366
  %2368 = vmatmul.f32.gmra.mxu0 %v2134
  %v2369 = vpop.f32.mrf.mxu0
  %v2370 = vadd.f32 0.0, %v2369
  %2371 = vmatmul.f32.gmra.mxu0 %v2267
  %v2372 = vpop.f32.mrf.mxu0
  %v2373 = vadd.f32 0.0, %v2372
  %2374 = vdwg.mxu0
  %v2375 = vadd.f32 %v2242, %v2352
  %v2376 = vadd.f32 %v2243, %v2355
  %v2377 = vadd.f32 %v2244, %v2358
  %v2378 = vadd.f32 %v2245, %v2361
  %v2379 = vadd.f32 %v2246, %v2364
  %v2380 = vadd.f32 %v2247, %v2367
  %v2381 = vadd.f32 %v2248, %v2370
  %v2382 = vadd.f32 %v2249, %v2373
  %v2383 = vld [vmem:[%s6] sm:$0x1]
  %v2385 = vperm.slane %v2383, 0
  %v2387 = vadd.f32 %v2310, %v2385
  %v2388 = vadd.f32 %v2311, %v2385
  %v2389 = vadd.f32 %v2312, %v2385
  %v2390 = vadd.f32 %v2313, %v2385
  %v2391 = vadd.f32 %v2314, %v2385
  %v2392 = vadd.f32 %v2315, %v2385
  %v2393 = vadd.f32 %v2316, %v2385
  %v2394 = vadd.f32 %v2317, %v2385
  %v2395 = vadd.f32 %v2375, %v2385
  %v2396 = vadd.f32 %v2376, %v2385
  %v2397 = vadd.f32 %v2377, %v2385
  %v2398 = vadd.f32 %v2378, %v2385
  %v2399 = vadd.f32 %v2379, %v2385
  %v2400 = vadd.f32 %v2380, %v2385
  %v2401 = vadd.f32 %v2381, %v2385
  %v2402 = vadd.f32 %v2382, %v2385
  %v2403 = vmax.f32 %v2387, %v2395
  %v2404 = vmax.f32 %v2388, %v2396
  %v2405 = vmax.f32 %v2389, %v2397
  %v2406 = vmax.f32 %v2390, %v2398
  %v2407 = vmax.f32 %v2391, %v2399
  %v2408 = vmax.f32 %v2392, %v2400
  %v2409 = vmax.f32 %v2393, %v2401
  %v2410 = vmax.f32 %v2394, %v2402
  %v2411 = vmax.f32 %v2403, %v2404
  %v2412 = vmax.f32 %v2411, 0.0
  %v2413 = vld [vmem:[%s7] sm:$0xff]
  %v2414 = vld [vmem:[%s7 + $0x8] sm:$0xff]
  %v2415 = vld [vmem:[%s7 + $0x10] sm:$0xff]
  %v2416 = vld [vmem:[%s7 + $0x18] sm:$0xff]
  %v2417 = vld [vmem:[%s7 + $0x20] sm:$0xff]
  %v2418 = vld [vmem:[%s7 + $0x28] sm:$0xff]
  %v2419 = vld [vmem:[%s7 + $0x30] sm:$0xff]
  %v2420 = vld [vmem:[%s7 + $0x38] sm:$0xff]
  %v2421 = vld [vmem:[%s7 + $0x40] sm:$0xff]
  %v2422 = vld [vmem:[%s7 + $0x48] sm:$0xff]
  %v2423 = vmax.f32 %v2405, %v2406
  %v2424 = vmax.f32 %v2423, 0.0
  %s2425 = scalar_lea.vmem %s7, 80
  %v2426 = vld [vmem:[%s2425] sm:$0xff]
  %v2427 = vld [vmem:[%s2425 + $0x8] sm:$0xff]
  %v2428 = vld [vmem:[%s2425 + $0x10] sm:$0xff]
  %v2429 = vld [vmem:[%s2425 + $0x18] sm:$0xff]
  %v2430 = vld [vmem:[%s2425 + $0x20] sm:$0xff]
  %v2431 = vld [vmem:[%s2425 + $0x28] sm:$0xff]
  %v2432 = vld [vmem:[%s2425 + $0x30] sm:$0xff]
  %v2433 = vld [vmem:[%s2425 + $0x38] sm:$0xff]
  %v2434 = vld [vmem:[%s2425 + $0x40] sm:$0xff]
  %v2435 = vld [vmem:[%s2425 + $0x48] sm:$0xff]
  %vm2436 = vcmask 654336
  %v2438 = vsel %vm2436, %v2424, 0
  %2440 = vmatpush.msra.mxu0 0.0
  %2441 = vmatpush.msra.mxu0 0.0
  %2442 = vmatpush.msra.mxu0 0.0
  %2443 = vmatpush.msra.mxu0 0.0
  %2444 = vmatpush.msra.mxu0 0.0
  %2445 = vmatpush.msra.mxu0 0.0
  %2446 = vmatpush.msra.mxu0 %v2435
  %2447 = vmatpush.msra.mxu0 %v2434
  %2448 = vmatpush.msra.mxu0 %v2433
  %2449 = vmatpush.msra.mxu0 %v2432
  %2450 = vmatpush.msra.mxu0 %v2431
  %2451 = vmatpush.msra.mxu0 %v2430
  %2452 = vmatpush.msra.mxu0 %v2429
  %2453 = vmatpush.msra.mxu0 %v2428
  %2454 = vmatpush.msra.mxu0 %v2427
  %2455 = vmatpush.msra.mxu0 %v2426
  %2456 = vmatmul.f32.gmra.mxu0 %v2438
  %v2457 = vpop.f32.mrf.mxu0
  %v2458 = vadd.f32 0.0, %v2457
  %2459 = vdwg.mxu0
  %v2461 = vsel %vm2436, %v2412, 0
  %2463 = vmatpush.msra.mxu0 0.0
  %2464 = vmatpush.msra.mxu0 0.0
  %2465 = vmatpush.msra.mxu0 0.0
  %2466 = vmatpush.msra.mxu0 0.0
  %2467 = vmatpush.msra.mxu0 0.0
  %2468 = vmatpush.msra.mxu0 0.0
  %2469 = vmatpush.msra.mxu0 %v2422
  %2470 = vmatpush.msra.mxu0 %v2421
  %2471 = vmatpush.msra.mxu0 %v2420
  %2472 = vmatpush.msra.mxu0 %v2419
  %2473 = vmatpush.msra.mxu0 %v2418
  %2474 = vmatpush.msra.mxu0 %v2417
  %2475 = vmatpush.msra.mxu0 %v2416
  %2476 = vmatpush.msra.mxu0 %v2415
  %2477 = vmatpush.msra.mxu0 %v2414
  %2478 = vmatpush.msra.mxu0 %v2413
  %2479 = vmatmul.f32.gmra.mxu0 %v2461
  %v2480 = vpop.f32.mrf.mxu0
  %v2481 = vadd.f32 %v2458, %v2480
  %2482 = vdwg.mxu0
  %v2483 = vmax.f32 %v2407, %v2408
  %v2484 = vmax.f32 %v2483, 0.0
  %s2485 = scalar_lea.vmem %s7, 160
  %v2486 = vld [vmem:[%s2485] sm:$0xff]
  %v2487 = vld [vmem:[%s2485 + $0x8] sm:$0xff]
  %v2488 = vld [vmem:[%s2485 + $0x10] sm:$0xff]
  %v2489 = vld [vmem:[%s2485 + $0x18] sm:$0xff]
  %v2490 = vld [vmem:[%s2485 + $0x20] sm:$0xff]
  %v2491 = vld [vmem:[%s2485 + $0x28] sm:$0xff]
  %v2492 = vld [vmem:[%s2485 + $0x30] sm:$0xff]
  %v2493 = vld [vmem:[%s2485 + $0x38] sm:$0xff]
  %v2494 = vld [vmem:[%s2485 + $0x40] sm:$0xff]
  %v2495 = vld [vmem:[%s2485 + $0x48] sm:$0xff]
  %v2497 = vsel %vm2436, %v2484, 0
  %2499 = vmatpush.msra.mxu0 0.0
  %2500 = vmatpush.msra.mxu0 0.0
  %2501 = vmatpush.msra.mxu0 0.0
  %2502 = vmatpush.msra.mxu0 0.0
  %2503 = vmatpush.msra.mxu0 0.0
  %2504 = vmatpush.msra.mxu0 0.0
  %2505 = vmatpush.msra.mxu0 %v2495
  %2506 = vmatpush.msra.mxu0 %v2494
  %2507 = vmatpush.msra.mxu0 %v2493
  %2508 = vmatpush.msra.mxu0 %v2492
  %2509 = vmatpush.msra.mxu0 %v2491
  %2510 = vmatpush.msra.mxu0 %v2490
  %2511 = vmatpush.msra.mxu0 %v2489
  %2512 = vmatpush.msra.mxu0 %v2488
  %2513 = vmatpush.msra.mxu0 %v2487
  %2514 = vmatpush.msra.mxu0 %v2486
  %2515 = vmatmul.f32.gmra.mxu0 %v2497
  %v2516 = vpop.f32.mrf.mxu0
  %v2517 = vadd.f32 0.0, %v2516
  %2518 = vdwg.mxu0
  %v2519 = vadd.f32 %v2481, %v2517
  %v2520 = vmax.f32 %v2409, %v2410
  %v2521 = vmax.f32 %v2520, 0.0
  %s2522 = scalar_lea.vmem %s7, 240
  %v2523 = vld [vmem:[%s2522] sm:$0xff]
  %v2524 = vld [vmem:[%s2522 + $0x8] sm:$0xff]
  %v2525 = vld [vmem:[%s2522 + $0x10] sm:$0xff]
  %v2526 = vld [vmem:[%s2522 + $0x18] sm:$0xff]
  %v2527 = vld [vmem:[%s2522 + $0x20] sm:$0xff]
  %v2528 = vld [vmem:[%s2522 + $0x28] sm:$0xff]
  %v2529 = vld [vmem:[%s2522 + $0x30] sm:$0xff]
  %v2530 = vld [vmem:[%s2522 + $0x38] sm:$0xff]
  %v2531 = vld [vmem:[%s2522 + $0x40] sm:$0xff]
  %v2532 = vld [vmem:[%s2522 + $0x48] sm:$0xff]
  %v2534 = vsel %vm2436, %v2521, 0
  %2536 = vmatpush.msra.mxu0 0.0
  %2537 = vmatpush.msra.mxu0 0.0
  %2538 = vmatpush.msra.mxu0 0.0
  %2539 = vmatpush.msra.mxu0 0.0
  %2540 = vmatpush.msra.mxu0 0.0
  %2541 = vmatpush.msra.mxu0 0.0
  %2542 = vmatpush.msra.mxu0 %v2532
  %2543 = vmatpush.msra.mxu0 %v2531
  %2544 = vmatpush.msra.mxu0 %v2530
  %2545 = vmatpush.msra.mxu0 %v2529
  %2546 = vmatpush.msra.mxu0 %v2528
  %2547 = vmatpush.msra.mxu0 %v2527
  %2548 = vmatpush.msra.mxu0 %v2526
  %2549 = vmatpush.msra.mxu0 %v2525
  %2550 = vmatpush.msra.mxu0 %v2524
  %2551 = vmatpush.msra.mxu0 %v2523
  %2552 = vmatmul.f32.gmra.mxu0 %v2534
  %v2553 = vpop.f32.mrf.mxu0
  %v2554 = vadd.f32 0.0, %v2553
  %2555 = vdwg.mxu0
  %v2556 = vadd.f32 %v2519, %v2554
  %v2557 = vld [vmem:[%s8] sm:$0x1]
  %v2559 = vperm.slane %v2557, 0
  %v2561 = vadd.f32 %v2556, %v2559
  %vm2562 = vcmask 80896
  %2563 = vst.msk [vmem:[%s9] sm:$0xff] %vm2562, %v2561
  // Predicated region
  $region38: #{cnn_forward.1} parent=0 // pred_check
    _
  $region39: #{cnn_forward.1} parent=0 // pred_check_branch
    %2565 = sbr.rel (0) target = $region41
  $region40: #{cnn_forward.1} parent=0 // pred_region
    _
  $region41: #{cnn_forward.1} parent=0 // pred_fallthru
    _
  // Predicated region
  $region42: #{cnn_forward.1} parent=0 // pred_check
    _
  $region43: #{cnn_forward.1} parent=0 // pred_check_branch
    %2567 = sbr.rel (0) target = $region45
  $region44: #{cnn_forward.1} parent=0 // pred_region
    _
  $region45: #{cnn_forward.1} parent=0 // pred_fallthru
    _

</llo_original>
